<compile_context>
chip_gen: v5e
topology: v5e:2x2
jax: 0.10.0
libtpu: 0.0.40
codegen_flags: <defaults>
</compile_context>

<pallas_src>
import functools

import jax
import jax.numpy as jnp
from jax.experimental import pallas as pl
from jax.experimental.pallas import tpu as pltpu


# ----------------------------------------------------------------------------
# Kernel 1: fused  momentum-update + encoder_q + encoder_k + normalize + l_pos
#   Wk_new = m*Wk + (1-m)*Wq ;  bk_new = m*bk + (1-m)*bq
#   q = normalize(im_q @ Wq + bq) ; k = normalize(im_k @ Wk_new + bk_new)
#   l_pos[n,0] = sum_c q[n,c] * k[n,c]
#   q, k are emitted in bf16 for the logits / enqueue paths.
# ----------------------------------------------------------------------------
def _fused_encoder_kernel(imq_ref, imk_ref, wq_ref, bq_ref, wk_ref, bk_ref,
                          q_ref, k_ref, wk_new_ref, bk_new_ref, lpos_ref, *, m):
    wq = wq_ref[...]
    bq = bq_ref[...]
    wk_new = wk_ref[...] * m + wq * (1.0 - m)
    bk_new = bk_ref[...] * m + bq * (1.0 - m)
    wk_new_ref[...] = wk_new
    bk_new_ref[...] = bk_new

    def encode_norm(x, w, b):
        y = jnp.dot(x, w, preferred_element_type=jnp.float32) + b
        ss = jnp.sum(y * y, axis=-1, keepdims=True)
        # F.normalize(dim=1, eps=1e-12): y / max(||y||, 1e-12) == y * rsqrt(max(ss, 1e-24))
        return y * jax.lax.rsqrt(jnp.maximum(ss, 1e-24))

    q = encode_norm(imq_ref[...], wq, bq)
    k = encode_norm(imk_ref[...], wk_new, bk_new)
    lpos_ref[...] = jnp.sum(q * k, axis=-1, keepdims=True)
    q_ref[...] = q.astype(q_ref.dtype)
    k_ref[...] = k.astype(k_ref.dtype)


def fused_encode(im_q, im_k, Wq, bq, Wk, bk, *, m):
    # TODO(synk): tile over N / C with W resident (constant index_map) once the
    # abstract make_encoder() is a realistically-sized network; whole-array VMEM
    # blocks are fine for these toy shapes.
    N = im_q.shape[0]
    D_in, C = Wq.shape
    vmem = pl.BlockSpec(memory_space=pltpu.MemorySpace.VMEM)
    return pl.pallas_call(
        functools.partial(_fused_encoder_kernel, m=m),
        out_shape=(
            jax.ShapeDtypeStruct((N, C), jnp.bfloat16),    # q  (bf16 for l_neg)
            jax.ShapeDtypeStruct((N, C), jnp.bfloat16),    # k  (bf16 for enqueue)
            jax.ShapeDtypeStruct((D_in, C), jnp.float32),  # Wk_new
            jax.ShapeDtypeStruct((1, C), jnp.float32),     # bk_new
            jax.ShapeDtypeStruct((N, 1), jnp.float32),     # l_pos
        ),
        in_specs=[vmem] * 6,
        out_specs=(vmem, vmem, vmem, vmem, vmem),
    )(im_q, im_k, Wq, bq, Wk, bk)


# ----------------------------------------------------------------------------
# Kernel 2: l_neg[n, j] = sum_c q[n, c] * queue[j, c]     (queue key-major, bf16)
# Streamed over K with large lane-dense tiles; K axis is fully parallel.
# ----------------------------------------------------------------------------
def _lneg_kernel(q_ref, queue_ref, lneg_ref):
    # NT matmul on the MXU: contract the lane dim (C) of both operands, f32 acc.
    lneg_ref[...] = jax.lax.dot_general(
        q_ref[...], queue_ref[...],
        dimension_numbers=(((1,), (1,)), ((), ())),
        preferred_element_type=jnp.float32,
    )


def moco_lneg(q_bf, queue_kc, *, tk=None):
    N, C = q_bf.shape
    K = queue_kc.shape[0]
    if tk is None:
        # Large lane-dense tile; ~C*tk*2 bytes per buffer (1 MiB at C=128,
        # tk=4096) => double-buffered it stays far under the v7x VMEM budget.
        # TODO(synk): sweep tk in [2048, 8192] per TPU generation.
        tk = min(K, 4096)
        while K % tk != 0:
            tk //= 2
    assert K % tk == 0 and tk % 8 == 0
    return pl.pallas_call(
        _lneg_kernel,
        out_shape=jax.ShapeDtypeStruct((N, K), jnp.float32),
        grid_spec=pltpu.PrefetchScalarGridSpec(
            num_scalar_prefetch=0,
            grid=(K // tk,),
            in_specs=[
                pl.BlockSpec((N, C), lambda j: (0, 0)),    # q resident
                pl.BlockSpec((tk, C), lambda j: (j, 0)),   # queue streamed
            ],
            out_specs=pl.BlockSpec((N, tk), lambda j: (0, j)),
        ),
        compiler_params=pltpu.CompilerParams(
            # l_pos lives in the fused encoder kernel, so this axis is truly
            # independent -> shardable across both TensorCores on v7x.
            dimension_semantics=("parallel",),
        ),
    )(q_bf, queue_kc)


# ----------------------------------------------------------------------------
# Kernel 3: in-place dequeue-and-enqueue of the new keys.
#   queue[ptr:ptr+N, :] = k (bf16).  The queue stays in HBM (memory_space=ANY)
#   and is aliased input->output, so only C*N*2 bytes are written.
# ----------------------------------------------------------------------------
def _enqueue_kernel(k_ref, ptr_ref, queue_in_ref, queue_out_ref, sem):
    del queue_in_ref  # same HBM buffer as queue_out_ref (aliased)
    n_new = k_ref.shape[0]
    ptr = pl.multiple_of(ptr_ref[0], n_new)  # ptr is always a multiple of N
    cp = pltpu.make_async_copy(
        k_ref, queue_out_ref.at[pl.ds(ptr, n_new), :], sem)
    cp.start()
    cp.wait()


def enqueue_keys(queue_kc, k_bf, queue_ptr):
    K, C = queue_kc.shape
    return pl.pallas_call(
        _enqueue_kernel,
        out_shape=jax.ShapeDtypeStruct((K, C), queue_kc.dtype),
        in_specs=[
            pl.BlockSpec(memory_space=pltpu.MemorySpace.VMEM),   # new keys [N, C]
            pl.BlockSpec(memory_space=pltpu.MemorySpace.SMEM),   # ptr [1] int32
            pl.BlockSpec(memory_space=pl.ANY),                   # queue (HBM)
        ],
        out_specs=pl.BlockSpec(memory_space=pl.ANY),
        scratch_shapes=[pltpu.SemaphoreType.DMA(())],
        input_output_aliases={2: 0},                             # queue -> out
    )(k_bf, queue_ptr, queue_kc)


# ----------------------------------------------------------------------------
# Full forward (mirrors MoCoTemplate.forward)
# ----------------------------------------------------------------------------
def moco_forward(params, state, im_q, im_k, labels, *, m):
    Wq, bq = params["Wq"], params["bq"]
    Wk, bk = params["Wk"], params["bk"]
    queue_kc = state["queue_kc"]        # [K, C] bf16, key-major
    label_queue = state["label_queue"]
    queue_ptr = state["queue_ptr"]

    # single launch: momentum update + encoder_q + encoder_k + normalize + l_pos
    q_bf, k_bf, Wk_new, bk_new, l_pos = fused_encode(
        im_q, im_k, Wq, bq, Wk, bk, m=m)

    # l_neg against the *old* queue (queue.detach() in PyTorch)
    l_neg = moco_lneg(q_bf, queue_kc)

    # dequeue-and-enqueue: in-place write of the N new key rows (aliased)
    new_queue_kc = enqueue_keys(queue_kc, k_bf, queue_ptr)

    N = k_bf.shape[0]
    K = queue_kc.shape[0]
    ptr = queue_ptr[0]
    # label_queue / ptr bookkeeping is tiny pure data movement -> plain JAX.
    new_label_queue = jax.lax.dynamic_update_slice(label_queue, labels, (ptr,))
    new_ptr = jnp.remainder(ptr + N, K)

    new_params = dict(Wq=Wq, bq=bq, Wk=Wk_new, bk=bk_new)
    new_state = dict(
        queue_kc=new_queue_kc,
        label_queue=new_label_queue,
        queue_ptr=queue_ptr.at[0].set(new_ptr),
    )
    # forward returns (l_pos, l_neg, labels, label_queue-after-enqueue)
    return (l_pos, l_neg, labels, new_label_queue), new_params, new_state


if __name__ == "__main__":
    # Small, deterministic shapes consistent with the module's forward.
    N, D_in, C, K = 8, 32, 128, 8192   # batch, input feats, d_rep, queue size
    m_momentum, T = 0.999, 0.07
    assert K % N == 0

    key = jax.random.PRNGKey(0)
    k1, k2, k3, k4, k5, k6, k7 = jax.random.split(key, 7)

    Wq = 0.02 * jax.random.normal(k1, (D_in, C), jnp.float32)
    bq = jnp.zeros((1, C), jnp.float32)
    # key encoder = query encoder copy at __init__; perturb slightly here to
    # emulate a later training step so the momentum path is actually exercised.
    Wk = Wq + 1e-3 * jax.random.normal(k6, (D_in, C), jnp.float32)
    bk = bq + 1e-3 * jax.random.normal(k7, (1, C), jnp.float32)
    params = dict(Wq=Wq, bq=bq, Wk=Wk, bk=bk)

    # queue: randn [C, K], normalized along dim=0 (as in __init__), stored
    # key-major [K, C] in bf16.
    queue_ck = jax.random.normal(k2, (C, K), jnp.float32)
    queue_ck = queue_ck / jnp.maximum(
        jnp.sqrt(jnp.sum(queue_ck * queue_ck, axis=0, keepdims=True)), 1e-12)
    queue_kc = queue_ck.T.astype(jnp.bfloat16)

    state = dict(
        queue_kc=queue_kc,
        label_queue=-jnp.ones((K,), jnp.int32),
        queue_ptr=jnp.zeros((1,), jnp.int32),
    )

    im_q = jax.random.normal(k3, (N, D_in), jnp.float32)
    im_k = jax.random.normal(k4, (N, D_in), jnp.float32)
    labels = jax.random.randint(k5, (N,), 0, 10, dtype=jnp.int32)

    # NOTE: in a real training loop, donate `state` (jit donate_argnums) so the
    # aliased enqueue kernel updates the HBM queue truly in place, no copy.
    fwd = jax.jit(moco_forward, static_argnames=("m",))

    queue_before = state["queue_kc"]
    (l_pos, l_neg, labels_out, label_queue_out), new_params, new_state = fwd(
        params, state, im_q, im_k, labels, m=m_momentum)
    jax.block_until_ready((l_pos, l_neg, labels_out, label_queue_out))
    jax.block_until_ready(new_state)

    # ---------------- plain-JAX reference & sanity checks -------------------
    def norm(x):
        return x / jnp.maximum(
            jnp.sqrt(jnp.sum(x * x, axis=1, keepdims=True)), 1e-12)

    Wk_ref = Wk * m_momentum + Wq * (1.0 - m_momentum)
    bk_ref = bk * m_momentum + bq * (1.0 - m_momentum)
    q_ref = norm(im_q @ Wq + bq)
    k_ref = norm(im_k @ Wk_ref + bk_ref)
    l_pos_ref = jnp.sum(q_ref * k_ref, axis=1, keepdims=True)
    q_bf_ref = q_ref.astype(jnp.bfloat16).astype(jnp.float32)
    l_neg_ref = q_bf_ref @ queue_before.astype(jnp.float32).T

    assert l_pos.shape == (N, 1) and l_neg.shape == (N, K)
    assert jnp.allclose(l_pos, l_pos_ref, atol=1e-4, rtol=1e-4)
    assert jnp.allclose(l_neg, l_neg_ref, atol=5e-3)
    assert jnp.allclose(new_params["Wk"], Wk_ref, atol=1e-6)
    assert jnp.allclose(new_params["bk"], bk_ref, atol=1e-6)
    # enqueue: first N rows hold the new (bf16) keys, the rest is untouched.
    assert jnp.allclose(new_state["queue_kc"][:N].astype(jnp.float32),
                        k_ref, atol=5e-3)
    assert jnp.array_equal(new_state["queue_kc"][N:], queue_before[N:])
    assert jnp.all(label_queue_out[:N] == labels)
    assert jnp.all(label_queue_out[N:] == -1)
    assert int(new_state["queue_ptr"][0]) == N % K

    print("KERNEL_OK")
</pallas_src>

<mosaic_0001>
module attributes {stable_mosaic.version = 11 : i64} {
  func.func @_lneg_kernel(%arg0: i32, %arg1: memref<8x128xbf16, #tpu.memory_space<vmem>>, %arg2: memref<4096x128xbf16, #tpu.memory_space<vmem>>, %arg3: memref<8x4096xf32, #tpu.memory_space<vmem>>) attributes {dimension_semantics = [#tpu.dimension_semantics<parallel>], iteration_bounds = array<i64: 2>, scalar_prefetch = 0 : i64, scratch_operands = 0 : i64, tpu.core_type = #tpu.core_type<tc>, window_params = [{pipeline_mode = #tpu.pipeline_mode<synchronous>, transform_indices = @transform_0, window_bounds = array<i64: 8, 128>}, {transform_indices = @transform_1, window_bounds = array<i64: 4096, 128>}, {transform_indices = @transform_2, window_bounds = array<i64: 8, 4096>}]} {
    %c0 = arith.constant 0 : index
    %c0_0 = arith.constant 0 : index
    %0 = vector.load %arg1[%c0, %c0_0] : memref<8x128xbf16, #tpu.memory_space<vmem>>, vector<8x128xbf16>
    %c0_1 = arith.constant 0 : index
    %c0_2 = arith.constant 0 : index
    %1 = vector.load %arg2[%c0_1, %c0_2] : memref<4096x128xbf16, #tpu.memory_space<vmem>>, vector<4096x128xbf16>
    %cst = arith.constant dense<0.000000e+00> : vector<8x4096xf32>
    %2 = tpu.matmul %0, %1, %cst {dimension_numbers = #tpu.dot_dimension_numbers<[1], [1], [0], [0], [0, 0, 1, 0], [], []>} : vector<8x128xbf16>, vector<4096x128xbf16>, vector<8x4096xf32> -> vector<8x4096xf32>
    %c0_3 = arith.constant 0 : index
    %c0_4 = arith.constant 0 : index
    %3 = vector.load %arg3[%c0_3, %c0_4] : memref<8x4096xf32, #tpu.memory_space<vmem>>, vector<8x4096xf32>
    tpu.vector_store %arg3[%c0_3, %c0_4], %2 {strides = array<i32>} : memref<8x4096xf32, #tpu.memory_space<vmem>>, vector<8x4096xf32>,
    return
  }
  func.func @transform_0(%arg0: i32) -> (i32, i32) {
    %c0_i32 = arith.constant 0 : i32
    %c0_i32_0 = arith.constant 0 : i32
    %c0_i32_1 = arith.constant 0 : i32
    return %c0_i32, %c0_i32_0 : i32, i32
  }
  func.func @transform_1(%arg0: i32) -> (i32, i32) {
    %c0_i32 = arith.constant 0 : i32
    %c0_i32_0 = arith.constant 0 : i32
    return %arg0, %c0_i32 : i32, i32
  }
  func.func @transform_2(%arg0: i32) -> (i32, i32) {
    %c0_i32 = arith.constant 0 : i32
    %c0_i32_0 = arith.constant 0 : i32
    return %c0_i32, %arg0 : i32, i32
  }
}

module attributes {stable_mosaic.version = 11 : i64} {
  func.func @_fused_encoder_kernel(%arg0: memref<8x32xf32, #tpu.memory_space<vmem>>, %arg1: memref<8x32xf32, #tpu.memory_space<vmem>>, %arg2: memref<32x128xf32, #tpu.memory_space<vmem>>, %arg3: memref<1x128xf32, #tpu.memory_space<vmem>>, %arg4: memref<32x128xf32, #tpu.memory_space<vmem>>, %arg5: memref<1x128xf32, #tpu.memory_space<vmem>>, %arg6: memref<8x128xbf16, #tpu.memory_space<vmem>>, %arg7: memref<8x128xbf16, #tpu.memory_space<vmem>>, %arg8: memref<32x128xf32, #tpu.memory_space<vmem>>, %arg9: memref<1x128xf32, #tpu.memory_space<vmem>>, %arg10: memref<8x1xf32, #tpu.memory_space<vmem>>) attributes {dimension_semantics = [], scalar_prefetch = 0 : i64, scratch_operands = 0 : i64, tpu.core_type = #tpu.core_type<tc>} {
    %c0 = arith.constant 0 : index
    %c0_0 = arith.constant 0 : index
    %0 = vector.load %arg2[%c0, %c0_0] : memref<32x128xf32, #tpu.memory_space<vmem>>, vector<32x128xf32>
    %c0_1 = arith.constant 0 : index
    %c0_2 = arith.constant 0 : index
    %1 = vector.load %arg3[%c0_1, %c0_2] : memref<1x128xf32, #tpu.memory_space<vmem>>, vector<1x128xf32>
    %c0_3 = arith.constant 0 : index
    %c0_4 = arith.constant 0 : index
    %2 = vector.load %arg4[%c0_3, %c0_4] : memref<32x128xf32, #tpu.memory_space<vmem>>, vector<32x128xf32>
    %cst = arith.constant 9.990000e-01 : f32
    %3 = vector.broadcast %cst : f32 to vector<32x128xf32>
    %4 = arith.mulf %2, %3 : vector<32x128xf32>
    %cst_5 = arith.constant 1.000000e-03 : f32
    %5 = vector.broadcast %cst_5 : f32 to vector<32x128xf32>
    %6 = arith.mulf %0, %5 : vector<32x128xf32>
    %7 = arith.addf %4, %6 : vector<32x128xf32>
    %c0_6 = arith.constant 0 : index
    %c0_7 = arith.constant 0 : index
    %8 = vector.load %arg5[%c0_6, %c0_7] : memref<1x128xf32, #tpu.memory_space<vmem>>, vector<1x128xf32>
    %cst_8 = arith.constant 9.990000e-01 : f32
    %9 = vector.broadcast %cst_8 : f32 to vector<1x128xf32>
    %10 = arith.mulf %8, %9 : vector<1x128xf32>
    %cst_9 = arith.constant 1.000000e-03 : f32
    %11 = vector.broadcast %cst_9 : f32 to vector<1x128xf32>
    %12 = arith.mulf %1, %11 : vector<1x128xf32>
    %13 = arith.addf %10, %12 : vector<1x128xf32>
    %c0_10 = arith.constant 0 : index
    %c0_11 = arith.constant 0 : index
    %14 = vector.load %arg8[%c0_10, %c0_11] : memref<32x128xf32, #tpu.memory_space<vmem>>, vector<32x128xf32>
    tpu.vector_store %arg8[%c0_10, %c0_11], %7 {strides = array<i32>} : memref<32x128xf32, #tpu.memory_space<vmem>>, vector<32x128xf32>,
    %c0_12 = arith.constant 0 : index
    %c0_13 = arith.constant 0 : index
    %15 = vector.load %arg9[%c0_12, %c0_13] : memref<1x128xf32, #tpu.memory_space<vmem>>, vector<1x128xf32>
    tpu.vector_store %arg9[%c0_12, %c0_13], %13 {strides = array<i32>} : memref<1x128xf32, #tpu.memory_space<vmem>>, vector<1x128xf32>,
    %c0_14 = arith.constant 0 : index
    %c0_15 = arith.constant 0 : index
    %16 = vector.load %arg0[%c0_14, %c0_15] : memref<8x32xf32, #tpu.memory_space<vmem>>, vector<8x32xf32>
    %cst_16 = arith.constant dense<0.000000e+00> : vector<8x128xf32>
    %17 = tpu.matmul %16, %0, %cst_16 {dimension_numbers = #tpu.dot_dimension_numbers<[1], [0], [0], [1], [0, 0, 1, 1], [], []>} : vector<8x32xf32>, vector<32x128xf32>, vector<8x128xf32> -> vector<8x128xf32>
    %18 = vector.broadcast %1 : vector<1x128xf32> to vector<8x128xf32>
    %19 = arith.addf %17, %18 : vector<8x128xf32>
    %20 = arith.mulf %19, %19 : vector<8x128xf32>
    %cst_17 = arith.constant dense<0.000000e+00> : vector<8xf32>
    %21 = vector.multi_reduction <add>, %20, %cst_17 [1] : vector<8x128xf32> to vector<8xf32>
    %22 = vector.shape_cast %21 : vector<8xf32> to vector<8x1xf32>
    %cst_18 = arith.constant 1.000000e-24 : f32
    %23 = vector.broadcast %cst_18 : f32 to vector<8x1xf32>
    %24 = arith.maximumf %22, %23 : vector<8x1xf32>
    %25 = math.rsqrt %24 : vector<8x1xf32>
    %26 = vector.broadcast %25 : vector<8x1xf32> to vector<8x128xf32>
    %27 = arith.mulf %19, %26 : vector<8x128xf32>
    %c0_19 = arith.constant 0 : index
    %c0_20 = arith.constant 0 : index
    %28 = vector.load %arg1[%c0_19, %c0_20] : memref<8x32xf32, #tpu.memory_space<vmem>>, vector<8x32xf32>
    %cst_21 = arith.constant dense<0.000000e+00> : vector<8x128xf32>
    %29 = tpu.matmul %28, %7, %cst_21 {dimension_numbers = #tpu.dot_dimension_numbers<[1], [0], [0], [1], [0, 0, 1, 1], [], []>} : vector<8x32xf32>, vector<32x128xf32>, vector<8x128xf32> -> vector<8x128xf32>
    %30 = vector.broadcast %13 : vector<1x128xf32> to vector<8x128xf32>
    %31 = arith.addf %29, %30 : vector<8x128xf32>
    %32 = arith.mulf %31, %31 : vector<8x128xf32>
    %cst_22 = arith.constant dense<0.000000e+00> : vector<8xf32>
    %33 = vector.multi_reduction <add>, %32, %cst_22 [1] : vector<8x128xf32> to vector<8xf32>
    %34 = vector.shape_cast %33 : vector<8xf32> to vector<8x1xf32>
    %cst_23 = arith.constant 1.000000e-24 : f32
    %35 = vector.broadcast %cst_23 : f32 to vector<8x1xf32>
    %36 = arith.maximumf %34, %35 : vector<8x1xf32>
    %37 = math.rsqrt %36 : vector<8x1xf32>
    %38 = vector.broadcast %37 : vector<8x1xf32> to vector<8x128xf32>
    %39 = arith.mulf %31, %38 : vector<8x128xf32>
    %40 = arith.mulf %27, %39 : vector<8x128xf32>
    %cst_24 = arith.constant dense<0.000000e+00> : vector<8xf32>
    %41 = vector.multi_reduction <add>, %40, %cst_24 [1] : vector<8x128xf32> to vector<8xf32>
    %42 = vector.shape_cast %41 : vector<8xf32> to vector<8x1xf32>
    %c0_25 = arith.constant 0 : index
    %c0_26 = arith.constant 0 : index
    %43 = vector.load %arg10[%c0_25, %c0_26] : memref<8x1xf32, #tpu.memory_space<vmem>>, vector<8x1xf32>
    tpu.vector_store %arg10[%c0_25, %c0_26], %42 {strides = array<i32>} : memref<8x1xf32, #tpu.memory_space<vmem>>, vector<8x1xf32>,
    %44 = arith.truncf %27 : vector<8x128xf32> to vector<8x128xbf16>
    %c0_27 = arith.constant 0 : index
    %c0_28 = arith.constant 0 : index
    %45 = vector.load %arg6[%c0_27, %c0_28] : memref<8x128xbf16, #tpu.memory_space<vmem>>, vector<8x128xbf16>
    tpu.vector_store %arg6[%c0_27, %c0_28], %44 {strides = array<i32>} : memref<8x128xbf16, #tpu.memory_space<vmem>>, vector<8x128xbf16>,
    %46 = arith.truncf %39 : vector<8x128xf32> to vector<8x128xbf16>
    %c0_29 = arith.constant 0 : index
    %c0_30 = arith.constant 0 : index
    %47 = vector.load %arg7[%c0_29, %c0_30] : memref<8x128xbf16, #tpu.memory_space<vmem>>, vector<8x128xbf16>
    tpu.vector_store %arg7[%c0_29, %c0_30], %46 {strides = array<i32>} : memref<8x128xbf16, #tpu.memory_space<vmem>>, vector<8x128xbf16>,
    return
  }
}

module attributes {stable_mosaic.version = 11 : i64} {
  func.func @_enqueue_kernel(%arg0: memref<8x128xbf16, #tpu.memory_space<vmem>>, %arg1: memref<1xi32, #tpu.memory_space<smem>>, %arg2: memref<8192x128xbf16, #tpu.memory_space<any>>, %arg3: memref<8192x128xbf16, #tpu.memory_space<any>>, %arg4: memref<!tpu.dma_semaphore, #tpu.memory_space<semaphore_mem>>) attributes {dimension_semantics = [], scalar_prefetch = 0 : i64, scratch_operands = 1 : i64, tpu.core_type = #tpu.core_type<tc>} {
    %c0 = arith.constant 0 : index
    %0 = memref.load %arg1[%c0] : memref<1xi32, #tpu.memory_space<smem>>
    %1 = tpu.assume_multiple %0, 8 : i32
    %c0_i32 = arith.constant 0 : i32
    %2 = tpu.memref_slice %arg3[%1, %c0_i32] : memref<8192x128xbf16, #tpu.memory_space<any>> -> memref<8x128xbf16, #tpu.memory_space<any>>
    tpu.enqueue_dma source(%arg0 : memref<8x128xbf16, #tpu.memory_space<vmem>>) target(%2 : memref<8x128xbf16, #tpu.memory_space<any>>) target_semaphore(%arg4 : memref<!tpu.dma_semaphore, #tpu.memory_space<semaphore_mem>>)
    %c0_i32_0 = arith.constant 0 : i32
    %3 = tpu.memref_slice %arg3[%1, %c0_i32_0] : memref<8192x128xbf16, #tpu.memory_space<any>> -> memref<8x128xbf16, #tpu.memory_space<any>>
    tpu.wait_dma2 semaphore(%arg4 : memref<!tpu.dma_semaphore, #tpu.memory_space<semaphore_mem>>) src(%arg0 : memref<8x128xbf16, #tpu.memory_space<vmem>>) dst(%3 : memref<8x128xbf16, #tpu.memory_space<any>>)
    return
  }
}

</mosaic_0001>

<llo_original>
// kernel: moco_forward.3
$region0: #{moco_forward.3}
  #allocation0 [shape = 'u32[]', space=smem, size = 0x4, offset = 0x4, fixed_abs, tag = 'smem constant byte address 0x4 - core index']
  #allocation1 [shape = 'u32[72,128]{1,0:T(1,128)}', space=vmem, size = 0x9000, scoped, tag = 'internal scratch']
  %s0 = inlined_call_operand.vmem [shape: f32[8,32], index: 0, kind: input, shape index: {}]
  %s1 = inlined_call_operand.vmem [shape: f32[8,32], index: 1, kind: input, shape index: {}]
  %s2 = inlined_call_operand.vmem [shape: f32[32,128], index: 2, kind: input, shape index: {}]
  %s3 = inlined_call_operand.vmem [shape: f32[1,128], index: 3, kind: input, shape index: {}]
  %s4 = inlined_call_operand.vmem [shape: f32[32,128], index: 4, kind: input, shape index: {}]
  %s5 = inlined_call_operand.vmem [shape: f32[1,128], index: 5, kind: input, shape index: {}]
  %s6 = inlined_call_operand.vmem [shape: bf16[8,128], index: 6, kind: output, shape index: {0}]
  %s7 = inlined_call_operand.vmem [shape: bf16[8,128], index: 7, kind: output, shape index: {1}]
  %s8 = inlined_call_operand.hbm [shape: f32[32,128], index: 8, kind: output, shape index: {2}]
  %s9 = inlined_call_operand.hbm [shape: f32[1,128], index: 9, kind: output, shape index: {3}]
  %s10 = inlined_call_operand.vmem [shape: f32[8,1], index: 10, kind: output, shape index: {4}]
  %11 = xla_tuple %s6, %s7, %s8, %s9, %s10
  %s12 = sld [smem:[#allocation0]]
  $region66: #{moco_forward.3} parent=0
    _
  %s14 = ssub.s32 1, %s12
  %s15 = scalar_select 0, %s14, %s12
  $region1: #{moco_forward.3} parent=0
    #allocation2 [shape = 'u8[16384]{0}', space=vmem, size = 0x4000, scoped, tag = 'output window, operand 2, single buffered']
    #allocation3 [shape = 's32[1]{0}', space=sflag, size = 0x4, scoped, tag = 'scoped memory for moco_forward.3']
    #allocation4 [shape = 'u8[512]{0}', space=vmem, size = 0x400, scoped, tag = 'output window, operand 3, single buffered']
    #allocation5 [shape = 's32[1]{0}', space=sflag, size = 0x4, scoped, tag = 'scoped memory for moco_forward.3']
    %16 = vsyncpa [#allocation3], 0
    %17 = vsyncpa [#allocation5], 0
    // Predicated region
    $region2: #{moco_forward.3} parent=1 // pred_check
      _
    $region3: #{moco_forward.3} parent=1 // pred_check_branch
      %19 = sbr.rel (0) target = $region5
    $region4: #{moco_forward.3} parent=1 // pred_region
      _
    $region5: #{moco_forward.3} parent=1 // pred_fallthru
      _
    // Predicated region
    $region6: #{moco_forward.3} parent=1 // pred_check
      _
    $region7: #{moco_forward.3} parent=1 // pred_check_branch
      %21 = sbr.rel (0) target = $region9
    $region8: #{moco_forward.3} parent=1 // pred_region
      _
    $region9: #{moco_forward.3} parent=1 // pred_fallthru
      _
    // Predicated region
    $region10: #{moco_forward.3} parent=1 // pred_check
      _
    $region11: #{moco_forward.3} parent=1 // pred_check_branch
      %23 = sbr.rel (0) target = $region13
    $region12: #{moco_forward.3} parent=1 // pred_region
      _
    $region13: #{moco_forward.3} parent=1 // pred_fallthru
      _
    // Predicated region
    $region14: #{moco_forward.3} parent=1 // pred_check
      _
    $region15: #{moco_forward.3} parent=1 // pred_check_branch
      %25 = sbr.rel (0) target = $region17
    $region16: #{moco_forward.3} parent=1 // pred_region
      _
    $region17: #{moco_forward.3} parent=1 // pred_fallthru
      _
    // Predicated region
    $region18: #{moco_forward.3} parent=1 // pred_check
      _
    $region19: #{moco_forward.3} parent=1 // pred_check_branch
      %27 = sbr.rel (0) target = $region21
    $region20: #{moco_forward.3} parent=1 // pred_region
      _
    $region21: #{moco_forward.3} parent=1 // pred_fallthru
      _
    // Predicated region
    $region22: #{moco_forward.3} parent=1 // pred_check
      _
    $region23: #{moco_forward.3} parent=1 // pred_check_branch
      %29 = sbr.rel (0) target = $region25
    $region24: #{moco_forward.3} parent=1 // pred_region
      _
    $region25: #{moco_forward.3} parent=1 // pred_fallthru
      _
    %v30 = vld [vmem:[%s2] sm:$0xff]
    %v31 = vld [vmem:[%s2 + $0x8] sm:$0xff]
    %v32 = vld [vmem:[%s2 + $0x10] sm:$0xff]
    %v33 = vld [vmem:[%s2 + $0x18] sm:$0xff]
    %v34 = vld [vmem:[%s3] sm:$0x1]
    %v35 = vld [vmem:[%s4] sm:$0xff]
    %v36 = vld [vmem:[%s4 + $0x8] sm:$0xff]
    %v37 = vld [vmem:[%s4 + $0x10] sm:$0xff]
    %v38 = vld [vmem:[%s4 + $0x18] sm:$0xff]
    %v39 = vmul.f32 %v35, 0.999
    %v40 = vmul.f32 %v36, 0.999
    %v41 = vmul.f32 %v37, 0.999
    %v42 = vmul.f32 %v38, 0.999
    %v43 = vmul.f32 %v30, 0.001
    %v44 = vmul.f32 %v31, 0.001
    %v45 = vmul.f32 %v32, 0.001
    %v46 = vmul.f32 %v33, 0.001
    %v47 = vadd.f32 %v39, %v43
    %v48 = vadd.f32 %v40, %v44
    %v49 = vadd.f32 %v41, %v45
    %v50 = vadd.f32 %v42, %v46
    %v51 = vld [vmem:[%s5] sm:$0x1]
    %v52 = vmul.f32 %v51, 0.999
    %v53 = vmul.f32 %v34, 0.001
    %v54 = vadd.f32 %v52, %v53
    %55 = vst [vmem:[#allocation2] sm:$0xff] %v47
    %56 = vst [vmem:[#allocation2 + $0x8] sm:$0xff] %v48
    %57 = vst [vmem:[#allocation2 + $0x10] sm:$0xff] %v49
    %58 = vst [vmem:[#allocation2 + $0x18] sm:$0xff] %v50
    %59 = vst [vmem:[#allocation4] sm:$0x1] %v54
    %v60 = vld [vmem:[%s0] sm:$0xff]
    %v62 = vperm.slane %v34, 0
    %vm64 = vcmask 261120
    %v66 = vsel %vm64, %v60, 0
    %68 = vmatpush.msra.mxu0 0.0
    %69 = vmatpush.msra.mxu0 0.0
    %70 = vmatpush.msra.mxu0 0.0
    %71 = vmatpush.msra.mxu0 0.0
    %72 = vmatpush.msra.mxu0 0.0
    %73 = vmatpush.msra.mxu0 0.0
    %74 = vmatpush.msra.mxu0 0.0
    %75 = vmatpush.msra.mxu0 0.0
    %76 = vmatpush.msra.mxu0 0.0
    %77 = vmatpush.msra.mxu0 0.0
    %78 = vmatpush.msra.mxu0 0.0
    %79 = vmatpush.msra.mxu0 0.0
    %80 = vmatpush.msra.mxu0 %v33
    %81 = vmatpush.msra.mxu0 %v32
    %82 = vmatpush.msra.mxu0 %v31
    %83 = vmatpush.msra.mxu0 %v30
    %84 = vmatmul.f32.gmra.mxu0 %v66
    %v85 = vpop.f32.mrf.mxu0
    %v86 = vadd.f32 %v62, %v85
    %87 = vdwg.mxu0
    %v88 = vmul.f32 %v86, %v86
    %89 = vadd.xlane.f32.xlu0 %v88
    %v90 = vpop.xlane.xlu0 %89
    %v91 = vmax.f32 %v90, 1e-24
    %v92 = vrsqrt.pop %v91
    %v93 = vmul.f32 %v92, %v91
    %v94 = vmul.f32 %v93, %v92
    %v95 = vmul.f32 0.5, %v94
    %v96 = vsub.f32 1.5, %v95
    %v97 = vmul.f32 %v92, %v96
    %vm98 = vweird.f32 %v91
    %vm99 = vweird.f32 %v92
    %vm100 = vmor %vm98, %vm99
    %v101 = vsel %vm100, %v92, %v97
    %v102 = vmul.f32 %v86, %v101
    %v103 = vld [vmem:[%s1] sm:$0xff]
    %v105 = vperm.slane %v54, 0
    %v108 = vsel %vm64, %v103, 0
    %110 = vmatpush.msra.mxu0 0.0
    %111 = vmatpush.msra.mxu0 0.0
    %112 = vmatpush.msra.mxu0 0.0
    %113 = vmatpush.msra.mxu0 0.0
    %114 = vmatpush.msra.mxu0 0.0
    %115 = vmatpush.msra.mxu0 0.0
    %116 = vmatpush.msra.mxu0 0.0
    %117 = vmatpush.msra.mxu0 0.0
    %118 = vmatpush.msra.mxu0 0.0
    %119 = vmatpush.msra.mxu0 0.0
    %120 = vmatpush.msra.mxu0 0.0
    %121 = vmatpush.msra.mxu0 0.0
    %122 = vmatpush.msra.mxu0 %v50
    %123 = vmatpush.msra.mxu0 %v49
    %124 = vmatpush.msra.mxu0 %v48
    %125 = vmatpush.msra.mxu0 %v47
    %126 = vmatmul.f32.gmra.mxu0 %v108
    %v127 = vpop.f32.mrf.mxu0
    %v128 = vadd.f32 %v105, %v127
    %129 = vdwg.mxu0
    %v130 = vmul.f32 %v128, %v128
    %131 = vadd.xlane.f32.xlu0 %v130
    %v132 = vpop.xlane.xlu0 %131
    %v133 = vmax.f32 %v132, 1e-24
    %v134 = vrsqrt.pop %v133
    %v135 = vmul.f32 %v134, %v133
    %v136 = vmul.f32 %v135, %v134
    %v137 = vmul.f32 0.5, %v136
    %v138 = vsub.f32 1.5, %v137
    %v139 = vmul.f32 %v134, %v138
    %vm140 = vweird.f32 %v133
    %vm141 = vweird.f32 %v134
    %vm142 = vmor %vm140, %vm141
    %v143 = vsel %vm142, %v134, %v139
    %v144 = vmul.f32 %v128, %v143
    %v145 = vmul.f32 %v102, %v144
    %146 = vadd.xlane.f32.xlu0 %v145
    %v147 = vpop.xlane.xlu0 %146
    %vm148 = vcmask 7168
    %149 = vst.msk [vmem:[%s10] sm:$0xff] %vm148, %v147
    %v150 = vpack.c.bf16 %v102, %v102
    %151 = vst [vmem:[%s6] sm:$0xf] %v150
    %v152 = vpack.c.bf16 %v144, %v144
    %153 = vst [vmem:[%s7] sm:$0xf] %v152
    // Predicated region
    $region26: #{moco_forward.3} parent=1 // pred_check
      _
    $region27: #{moco_forward.3} parent=1 // pred_check_branch
      %155 = sbr.rel (0) target = $region29
    $region28: #{moco_forward.3} parent=1 // pred_region
      _
    $region29: #{moco_forward.3} parent=1 // pred_fallthru
      _
    // Predicated region
    $region30: #{moco_forward.3} parent=1 // pred_check
      _
    $region31: #{moco_forward.3} parent=1 // pred_check_branch
      %157 = sbr.rel (0) target = $region33
    $region32: #{moco_forward.3} parent=1 // pred_region
      _
    $region33: #{moco_forward.3} parent=1 // pred_fallthru
      _
    // Predicated region
    $region34: #{moco_forward.3} parent=1 // pred_check
      _
    $region35: #{moco_forward.3} parent=1 // pred_check_branch
      %159 = sbr.rel (0) target = $region37
    $region36: #{moco_forward.3} parent=1 // pred_region
      %161 = vsyncadd [#allocation3], 0
      %s162 = sshll.u32 [#allocation2], 4
      %s163 = int_to_ptr.vmem [resolvable:$true] %s162
      %s164 = sshll.u32 %s8, 4
      %s165 = int_to_ptr.hbm [resolvable:$true] %s164
      %170 = dma.vmem_to_hbm [thread:$0]  %s163, 512, %s165, [#allocation3], 128, 128, 8
    $region37: #{moco_forward.3} parent=1 // pred_fallthru
      _
    // Predicated region
    $region38: #{moco_forward.3} parent=1 // pred_check
      _
    $region39: #{moco_forward.3} parent=1 // pred_check_branch
      %172 = sbr.rel (0) target = $region41
    $region40: #{moco_forward.3} parent=1 // pred_region
      %174 = vsyncadd [#allocation5], 0
      %s176 = sshll.u32 [#allocation4], 4
      %s177 = int_to_ptr.vmem [resolvable:$true] %s176
      %s178 = sshll.u32 %s9, 4
      %s179 = int_to_ptr.hbm [resolvable:$true] %s178
      %181 = dma.vmem_to_hbm [thread:$0]  %s177, 16, %s179, [#allocation5]
    $region41: #{moco_forward.3} parent=1 // pred_fallthru
      _
    // Predicated region
    $region42: #{moco_forward.3} parent=1 // pred_check
      _
    $region43: #{moco_forward.3} parent=1 // pred_check_branch
      %183 = sbr.rel (0) target = $region45
    $region44: #{moco_forward.3} parent=1 // pred_region
      _
    $region45: #{moco_forward.3} parent=1 // pred_fallthru
      _
    // Predicated region
    $region46: #{moco_forward.3} parent=1 // pred_check
      _
    $region47: #{moco_forward.3} parent=1 // pred_check_branch
      %185 = sbr.rel (0) target = $region49
    $region48: #{moco_forward.3} parent=1 // pred_region
      _
    $region49: #{moco_forward.3} parent=1 // pred_fallthru
      _
    // Predicated region
    $region50: #{moco_forward.3} parent=1 // pred_check
      _
    $region51: #{moco_forward.3} parent=1 // pred_check_branch
      %187 = sbr.rel (0) target = $region53
    $region52: #{moco_forward.3} parent=1 // pred_region
      _
    $region53: #{moco_forward.3} parent=1 // pred_fallthru
      _
    // Predicated region
    $region54: #{moco_forward.3} parent=1 // pred_check
      _
    $region55: #{moco_forward.3} parent=1 // pred_check_branch
      %189 = sbr.rel (0) target = $region57
    $region56: #{moco_forward.3} parent=1 // pred_region
      %191 = dma.done [#allocation3], 512
    $region57: #{moco_forward.3} parent=1 // pred_fallthru
      _
    // Predicated region
    $region58: #{moco_forward.3} parent=1 // pred_check
      _
    $region59: #{moco_forward.3} parent=1 // pred_check_branch
      %193 = sbr.rel (0) target = $region61
    $region60: #{moco_forward.3} parent=1 // pred_region
      %195 = dma.done [#allocation5], 16
    $region61: #{moco_forward.3} parent=1 // pred_fallthru
      _
    // Predicated region
    $region62: #{moco_forward.3} parent=1 // pred_check
      _
    $region63: #{moco_forward.3} parent=1 // pred_check_branch
      %197 = sbr.rel (0) target = $region65
    $region64: #{moco_forward.3} parent=1 // pred_region
      _
    $region65: #{moco_forward.3} parent=1 // pred_fallthru
      _
    %198 = vsyncpa [#allocation3], 1
    %199 = vsyncpa [#allocation5], 1

// kernel: moco_forward.5
$region0: #{moco_forward.5}
  #allocation0 [shape = 'u32[]', space=smem, size = 0x4, offset = 0x4, fixed_abs, tag = 'smem constant byte address 0x4 - core index']
  #allocation1 [shape = 'u32[72,128]{1,0:T(1,128)}', space=vmem, size = 0x9000, scoped, tag = 'internal scratch']
  #allocation2 [shape = 's32[1]{0}', space=sflag, size = 0x4, scoped, tag = 'scratch operand']
  #allocation3 [shape = 's32[1]{0:T(128)S(6)}', space=smem, size = 0x200, scoped, tag = 'scoped memory for moco_forward.5']
  #allocation4 [shape = 's32[]', space=sflag, size = 0x4, offset = 0, fixed_abs, tag = 'sflag constant byte address 0x0 - dummy sync flag']
  %s0 = inlined_call_operand.vmem [shape: bf16[8,128], index: 0, kind: input, shape index: {}]
  %s1 = inlined_call_operand.<no memory space> [shape: s32[1], index: 1, kind: input, shape index: {}]
  %s2 = inlined_call_operand.vmem [shape: bf16[8192,128], index: 2, kind: input, shape index: {}, may-alias: {2,3}]
  %s3 = inlined_call_operand.vmem [shape: bf16[8192,128], index: 3, kind: output, shape index: {}, may-alias: {2,3}]
  %s4 = sld [smem:[#allocation0]]
  $region40: #{moco_forward.5} parent=0
    _
  %s6 = ssub.s32 1, %s4
  %s7 = scalar_select 0, %s6, %s4
  %8 = sst [smem:[#allocation3]] %s1
  // Predicated region
  $region2: #{moco_forward.5} parent=0 // pred_check
    _
  $region3: #{moco_forward.5} parent=0 // pred_check_branch
    %10 = sbr.rel (0) target = $region5
  $region4: #{moco_forward.5} parent=0 // pred_region
    _
  $region5: #{moco_forward.5} parent=0 // pred_fallthru
    _
  // Predicated region
  $region6: #{moco_forward.5} parent=0 // pred_check
    _
  $region7: #{moco_forward.5} parent=0 // pred_check_branch
    %12 = sbr.rel (0) target = $region9
  $region8: #{moco_forward.5} parent=0 // pred_region
    _
  $region9: #{moco_forward.5} parent=0 // pred_fallthru
    _
  %s13 = sld [smem:[#allocation3]]
  %s14 = sshra.s32 %s13, 3
  %s15 = sand.u32 %s13, 7
  %s16 = smul.addr %s14, 4
  %s17 = scalar_lea.vmem %s3, %s16
  // Predicated region
  $region10: #{moco_forward.5} parent=0 // pred_check
    _
  $region11: #{moco_forward.5} parent=0 // pred_check_branch
    %19 = sbr.rel target = $region13
  $region12: #{moco_forward.5} parent=0 // pred_region
    // Predicated region
    $region25: #{moco_forward.5} parent=12 // pred_check
      _
    $region26: #{moco_forward.5} parent=12 // pred_check_branch
      %35 = sbr.rel (0) target = $region28
    $region27: #{moco_forward.5} parent=12 // pred_region
      %s37 = ssub.s32 16, 1
      loop: start=0, step=1, limit=1
      $region29: #{moco_forward.5} parent=27 // loop_pre_header
        _
      $region30: #{moco_forward.5} parent=27 // loop_header
        %s39 = sphi 0, %s43
        %p40 = scmp.ge.s32.totalorder %s39, 1
        %s44 = sphi %s0, %s0
        %s45 = sphi %s17, %s17
      $region31: #{moco_forward.5} parent=27 // loop_header_branch
        %42 = sbr.rel (%p40) target = $region35
      $region32: #{moco_forward.5} parent=27 // loop_body
        %v46 = vld [vmem:[%s44] sm:%s37]
        %47 = vst [vmem:[%s45] sm:%s37] %v46
      $region33: #{moco_forward.5} parent=27 // loop_footer
        %s43 = sadd.s32 1, %s39
      $region34: #{moco_forward.5} parent=27 // loop_footer_branch
        %38 = sbr.rel target = $region30
      $region35: #{moco_forward.5} parent=27 // loop_exit
        _
    $region28: #{moco_forward.5} parent=12 // pred_fallthru
      _
  $region13: #{moco_forward.5} parent=0 // pred_fallthru
    _
  // Predicated region
  $region14: #{moco_forward.5} parent=0 // pred_check
    _
  $region15: #{moco_forward.5} parent=0 // pred_check_branch
    %21 = sbr.rel (0) target = $region17
  $region16: #{moco_forward.5} parent=0 // pred_region
    %s23 = ssub.s32 16, 1
    loop: start=0, step=1, limit=1
    $region18: #{moco_forward.5} parent=16 // loop_pre_header
      _
    $region19: #{moco_forward.5} parent=16 // loop_header
      %s25 = sphi 0, %s29
      %p26 = scmp.ge.s32.totalorder %s25, 1
      %s30 = sphi %s0, %s0
      %s31 = sphi %s17, %s17
    $region20: #{moco_forward.5} parent=16 // loop_header_branch
      %28 = sbr.rel (%p26) target = $region24
    $region21: #{moco_forward.5} parent=16 // loop_body
      %v32 = vld [vmem:[%s30] sm:%s23]
      %33 = vst [vmem:[%s31] sm:%s23] %v32
    $region22: #{moco_forward.5} parent=16 // loop_footer
      %s29 = sadd.s32 1, %s25
    $region23: #{moco_forward.5} parent=16 // loop_footer_branch
      %24 = sbr.rel target = $region19
    $region24: #{moco_forward.5} parent=16 // loop_exit
      _
  $region17: #{moco_forward.5} parent=0 // pred_fallthru
    _
  // Predicated region
  $region36: #{moco_forward.5} parent=0 // pred_check
    _
  $region37: #{moco_forward.5} parent=0 // pred_check_branch
    %50 = sbr.rel (0) target = $region39
  $region38: #{moco_forward.5} parent=0 // pred_region
    %51 = vsyncadd [#allocation2], 64
  $region39: #{moco_forward.5} parent=0 // pred_fallthru
    _
  %s52 = smul.u32 4, 1
  %s53 = smul.u32 %s52, 1
  %s54 = sshll.u32 %s53, 4
  %55 = dma.done [#allocation2], %s54
  %56 = vsyncmov [#allocation2]
  %s57 = vpop.sfrf %56
  %p58 = scmp.eq.s32.totalorder %s57, 0
  %p59 = pneg %p58
  %61 = shalt.err (%p59)

// kernel: moco_forward.4
$region0: #{moco_forward.4}
  #allocation0 [shape = 'u32[]', space=smem, size = 0x4, offset = 0x4, fixed_abs, tag = 'smem constant byte address 0x4 - core index']
  #allocation1 [shape = 'u32[72,128]{1,0:T(1,128)}', space=vmem, size = 0x9000, scoped, tag = 'internal scratch']
  %s0 = inlined_call_operand.vmem [shape: bf16[8,128], index: 0, kind: input, shape index: {}]
  %s1 = inlined_call_operand.vmem [shape: bf16[8192,128], index: 1, kind: input, shape index: {}]
  %s2 = inlined_call_operand.hbm [shape: f32[8,8192], index: 2, kind: output, shape index: {}]
  %s3 = sld [smem:[#allocation0]]
  $region41: #{moco_forward.4} parent=0
    _
  %s5 = ssub.s32 1, %s3
  %s6 = scalar_select 0, %s5, %s3
  $region1: #{moco_forward.4} parent=0
    #allocation2 [shape = 'u8[262144]{0}', space=vmem, size = 0x40000, scoped, tag = 'output window, operand 0']
    #allocation3 [shape = 's32[2]{0}', space=sflag, size = 0x8, scoped, tag = 'scoped memory for moco_forward.4']
    %7 = vsyncpa [#allocation3], 0
    %s8 = scalar_lea.sflag [#allocation3], 1
    %9 = vsyncpa %s8, 0
    loop: start=0, step=1, limit=4
    $region2: #{moco_forward.4} parent=1 // loop_pre_header
      _
    $region3: #{moco_forward.4} parent=1 // loop_header
      %s11 = sphi 0, %s15
      %p12 = scmp.ge.s32.totalorder %s11, 4
      %s19 = sphi 0, %s19
      %s21 = sphi 0, %s19
      %s22 = sphi 0, %s21
      %s36 = sphi 0, %s22
      %s42 = sphi 0, %s44
      %s45 = sphi 0, %s42
      %s46 = sphi 0, %s45
      %s62 = sphi 0, %s46
      %s68 = sphi 0, %s70
      %s71 = sphi 0, %s68
      %s72 = sphi 0, %s71
      %s88 = sphi 0, %s72
    $region4: #{moco_forward.4} parent=1 // loop_header_branch
      %14 = sbr.rel (%p12) target = $region8
    $region5: #{moco_forward.4} parent=1 // loop_body
      %s16 = ssub.s32 %s11, 1
      %s17 = ssub.s32 %s11, 2
      %s18 = sadd.s32 %s11, 1
      %s20 = sadd.s32 %s19, 1
      %p23 = scmp.eq.s32.totalorder %s11, 1
      %p24 = scmp.ne.s32.totalorder %s19, %s21
      %p25 = scmp.eq.s32.totalorder %s11, 0
      %p26 = por %p24, %p25
      %p27 = scmp.ne.s32.totalorder %s19, %s21
      %p28 = scmp.eq.s32.totalorder %s16, 1
      %p29 = por %p27, %p28
      %p30 = scmp.ne.s32.totalorder %s21, %s22
      %p31 = scmp.eq.s32.totalorder %s16, 0
      %p32 = por %p30, %p31
      %p33 = scmp.ne.s32.totalorder %s21, %s22
      %p34 = scmp.eq.s32.totalorder %s17, 1
      %p35 = por %p33, %p34
      %p37 = scmp.ne.s32.totalorder %s22, %s36
      %p38 = scmp.eq.s32.totalorder %s17, 0
      %p39 = por %p37, %p38
      %s40 = ssub.s32 %s11, %s18
      %p41 = scmp.eq.s32.totalorder %s40, 0
      %s43 = sadd.s32 %s42, 1
      %s44 = scalar_select %p41, %s42, %s43
      %p47 = pneg %p41
      %p48 = scmp.eq.s32.totalorder %s11, 1
      %p49 = por %p47, %p48
      %p50 = scmp.ne.s32.totalorder %s42, %s45
      %p51 = scmp.eq.s32.totalorder %s11, 0
      %p52 = por %p50, %p51
      %p53 = scmp.ne.s32.totalorder %s42, %s45
      %p54 = scmp.eq.s32.totalorder %s16, 1
      %p55 = por %p53, %p54
      %p56 = scmp.ne.s32.totalorder %s45, %s46
      %p57 = scmp.eq.s32.totalorder %s16, 0
      %p58 = por %p56, %p57
      %p59 = scmp.ne.s32.totalorder %s45, %s46
      %p60 = scmp.eq.s32.totalorder %s17, 1
      %p61 = por %p59, %p60
      %p63 = scmp.ne.s32.totalorder %s46, %s62
      %p64 = scmp.eq.s32.totalorder %s17, 0
      %p65 = por %p63, %p64
      %s66 = ssub.s32 %s11, %s18
      %p67 = scmp.eq.s32.totalorder %s66, 0
      %s69 = sadd.s32 %s68, 1
      %s70 = scalar_select %p67, %s68, %s69
      %p73 = pneg %p67
      %p74 = scmp.eq.s32.totalorder %s11, 1
      %p75 = por %p73, %p74
      %p76 = scmp.ne.s32.totalorder %s68, %s71
      %p77 = scmp.eq.s32.totalorder %s11, 0
      %p78 = por %p76, %p77
      %p79 = scmp.ne.s32.totalorder %s68, %s71
      %p80 = scmp.eq.s32.totalorder %s16, 1
      %p81 = por %p79, %p80
      %p82 = scmp.ne.s32.totalorder %s71, %s72
      %p83 = scmp.eq.s32.totalorder %s16, 0
      %p84 = por %p82, %p83
      %p85 = scmp.ne.s32.totalorder %s71, %s72
      %p86 = scmp.eq.s32.totalorder %s17, 1
      %p87 = por %p85, %p86
      %p89 = scmp.ne.s32.totalorder %s72, %s88
      %p90 = scmp.eq.s32.totalorder %s17, 0
      %p91 = por %p89, %p90
      %p92 = scmp.le.s32.totalorder 1, %s11
      %p93 = scmp.lt.s32.totalorder %s11, 3
      %p94 = pnand %p92, %p93
      %p95 = pneg %p94
      // Predicated region
      $region9: #{moco_forward.4} parent=5 // pred_check
        _
      $region10: #{moco_forward.4} parent=5 // pred_check_branch
        %97 = sbr.rel (%p94) target = $region12
      $region11: #{moco_forward.4} parent=5 // pred_region
        %s98 = ssub.s32 %s11, 1
        // Predicated region
        $region13: #{moco_forward.4} parent=11 // pred_check
          %p99 = pneg %p32
        $region14: #{moco_forward.4} parent=11 // pred_check_branch
          %101 = sbr.rel (%p99) target = $region16
        $region15: #{moco_forward.4} parent=11 // pred_region
          _
        $region16: #{moco_forward.4} parent=11 // pred_fallthru
          _
      $region12: #{moco_forward.4} parent=5 // pred_fallthru
        _
      %p102 = scmp.lt.s32.totalorder %s11, 2
      // Predicated region
      $region17: #{moco_forward.4} parent=5 // pred_check
        %p103 = pneg %p102
      $region18: #{moco_forward.4} parent=5 // pred_check_branch
        %105 = sbr.rel (%p103) target = $region20
      $region19: #{moco_forward.4} parent=5 // pred_region
        // Predicated region
        $region21: #{moco_forward.4} parent=19 // pred_check
          %p106 = pneg %p52
        $region22: #{moco_forward.4} parent=19 // pred_check_branch
          %108 = sbr.rel (%p106) target = $region24
        $region23: #{moco_forward.4} parent=19 // pred_region
          %s109 = smul.u32 512, %s11
          %p110 = scmp.lt.s32.totalorder %s109, 1023
          %s111 = scalar_select %p110, %s109, 1023
          %s112 = smul.addr %s111, 4
          %s113 = scalar_lea.vmem %s1, %s112
          %s114 = smul.u32 512, %s11
        $region24: #{moco_forward.4} parent=19 // pred_fallthru
          _
      $region20: #{moco_forward.4} parent=5 // pred_fallthru
        _
      %p115 = scmp.le.s32.totalorder 1, %s11
      %p116 = scmp.lt.s32.totalorder %s11, 3
      %p117 = pnand %p115, %p116
      %p118 = pneg %p117
      // Predicated region
      $region25: #{moco_forward.4} parent=5 // pred_check
        _
      $region26: #{moco_forward.4} parent=5 // pred_check_branch
        %120 = sbr.rel (%p117) target = $region28
      $region27: #{moco_forward.4} parent=5 // pred_region
        %s121 = ssub.s32 %s11, 1
        %p122 = pneg %p32
        %p123 = pneg %p29
        %s124 = smul.u32 512, %s16
        %p125 = scmp.lt.s32.totalorder %s124, 1023
        %s126 = scalar_select %p125, %s124, 1023
        %s127 = smul.addr %s126, 4
        %s128 = scalar_lea.vmem %s1, %s127
        %p129 = pneg %p58
        %p130 = pneg %p55
        %p131 = pneg %p84
        %p132 = pneg %p81
        %s133 = sand.u32 %s71, 1
        %s134 = scalar_lea.sflag [#allocation3], %s133
        %s135 = sand.u32 %s71, 1
        %s136 = smul.addr %s135, 256
        %s137 = scalar_lea.vmem [#allocation2], %s136
        %s138 = smul.u32 512, %s16
        %p139 = scmp.lt.s32.totalorder %s138, 1023
        %s140 = scalar_select %p139, %s138, 1023
        %s141 = smul.addr %s140, 4
        %s142 = scalar_lea.vmem %s1, %s141
        %s143 = smul.u32 512, %s16
        %s144 = smul.u32 32, %s16
        %v145 = vld [vmem:[%s0] sm:$0xf]
        %v146 = vld [vmem:[%s142] sm:$0xf]
        %v147 = vld [vmem:[%s142 + $0x4] sm:$0xf]
        %v148 = vld [vmem:[%s142 + $0x8] sm:$0xf]
        %v149 = vld [vmem:[%s142 + $0xc] sm:$0xf]
        %v150 = vld [vmem:[%s142 + $0x10] sm:$0xf]
        %v151 = vld [vmem:[%s142 + $0x14] sm:$0xf]
        %v152 = vld [vmem:[%s142 + $0x18] sm:$0xf]
        %v153 = vld [vmem:[%s142 + $0x1c] sm:$0xf]
        %v154 = vld [vmem:[%s142 + $0x20] sm:$0xf]
        %v155 = vld [vmem:[%s142 + $0x24] sm:$0xf]
        %v156 = vld [vmem:[%s142 + $0x28] sm:$0xf]
        %v157 = vld [vmem:[%s142 + $0x2c] sm:$0xf]
        %v158 = vld [vmem:[%s142 + $0x30] sm:$0xf]
        %v159 = vld [vmem:[%s142 + $0x34] sm:$0xf]
        %v160 = vld [vmem:[%s142 + $0x38] sm:$0xf]
        %v161 = vld [vmem:[%s142 + $0x3c] sm:$0xf]
        %v162 = vld [vmem:[%s142 + $0x40] sm:$0xf]
        %v163 = vld [vmem:[%s142 + $0x44] sm:$0xf]
        %v164 = vld [vmem:[%s142 + $0x48] sm:$0xf]
        %v165 = vld [vmem:[%s142 + $0x4c] sm:$0xf]
        %v166 = vld [vmem:[%s142 + $0x50] sm:$0xf]
        %v167 = vld [vmem:[%s142 + $0x54] sm:$0xf]
        %v168 = vld [vmem:[%s142 + $0x58] sm:$0xf]
        %v169 = vld [vmem:[%s142 + $0x5c] sm:$0xf]
        %v170 = vld [vmem:[%s142 + $0x60] sm:$0xf]
        %v171 = vld [vmem:[%s142 + $0x64] sm:$0xf]
        %v172 = vld [vmem:[%s142 + $0x68] sm:$0xf]
        %v173 = vld [vmem:[%s142 + $0x6c] sm:$0xf]
        %v174 = vld [vmem:[%s142 + $0x70] sm:$0xf]
        %v175 = vld [vmem:[%s142 + $0x74] sm:$0xf]
        %v176 = vld [vmem:[%s142 + $0x78] sm:$0xf]
        %v177 = vld [vmem:[%s142 + $0x7c] sm:$0xf]
        %v178 = vld [vmem:[%s142 + $0x80] sm:$0xf]
        %v179 = vld [vmem:[%s142 + $0x84] sm:$0xf]
        %v180 = vld [vmem:[%s142 + $0x88] sm:$0xf]
        %v181 = vld [vmem:[%s142 + $0x8c] sm:$0xf]
        %v182 = vld [vmem:[%s142 + $0x90] sm:$0xf]
        %v183 = vld [vmem:[%s142 + $0x94] sm:$0xf]
        %v184 = vld [vmem:[%s142 + $0x98] sm:$0xf]
        %v185 = vld [vmem:[%s142 + $0x9c] sm:$0xf]
        %v186 = vld [vmem:[%s142 + $0xa0] sm:$0xf]
        %v187 = vld [vmem:[%s142 + $0xa4] sm:$0xf]
        %v188 = vld [vmem:[%s142 + $0xa8] sm:$0xf]
        %v189 = vld [vmem:[%s142 + $0xac] sm:$0xf]
        %v190 = vld [vmem:[%s142 + $0xb0] sm:$0xf]
        %v191 = vld [vmem:[%s142 + $0xb4] sm:$0xf]
        %v192 = vld [vmem:[%s142 + $0xb8] sm:$0xf]
        %v193 = vld [vmem:[%s142 + $0xbc] sm:$0xf]
        %v194 = vld [vmem:[%s142 + $0xc0] sm:$0xf]
        %v195 = vld [vmem:[%s142 + $0xc4] sm:$0xf]
        %v196 = vld [vmem:[%s142 + $0xc8] sm:$0xf]
        %v197 = vld [vmem:[%s142 + $0xcc] sm:$0xf]
        %v198 = vld [vmem:[%s142 + $0xd0] sm:$0xf]
        %v199 = vld [vmem:[%s142 + $0xd4] sm:$0xf]
        %v200 = vld [vmem:[%s142 + $0xd8] sm:$0xf]
        %v201 = vld [vmem:[%s142 + $0xdc] sm:$0xf]
        %v202 = vld [vmem:[%s142 + $0xe0] sm:$0xf]
        %v203 = vld [vmem:[%s142 + $0xe4] sm:$0xf]
        %v204 = vld [vmem:[%s142 + $0xe8] sm:$0xf]
        %v205 = vld [vmem:[%s142 + $0xec] sm:$0xf]
        %v206 = vld [vmem:[%s142 + $0xf0] sm:$0xf]
        %v207 = vld [vmem:[%s142 + $0xf4] sm:$0xf]
        %v208 = vld [vmem:[%s142 + $0xf8] sm:$0xf]
        %v209 = vld [vmem:[%s142 + $0xfc] sm:$0xf]
        %v210 = vld [vmem:[%s142 + $0x100] sm:$0xf]
        %v211 = vld [vmem:[%s142 + $0x104] sm:$0xf]
        %v212 = vld [vmem:[%s142 + $0x108] sm:$0xf]
        %v213 = vld [vmem:[%s142 + $0x10c] sm:$0xf]
        %v214 = vld [vmem:[%s142 + $0x110] sm:$0xf]
        %v215 = vld [vmem:[%s142 + $0x114] sm:$0xf]
        %v216 = vld [vmem:[%s142 + $0x118] sm:$0xf]
        %v217 = vld [vmem:[%s142 + $0x11c] sm:$0xf]
        %v218 = vld [vmem:[%s142 + $0x120] sm:$0xf]
        %v219 = vld [vmem:[%s142 + $0x124] sm:$0xf]
        %v220 = vld [vmem:[%s142 + $0x128] sm:$0xf]
        %v221 = vld [vmem:[%s142 + $0x12c] sm:$0xf]
        %v222 = vld [vmem:[%s142 + $0x130] sm:$0xf]
        %v223 = vld [vmem:[%s142 + $0x134] sm:$0xf]
        %v224 = vld [vmem:[%s142 + $0x138] sm:$0xf]
        %v225 = vld [vmem:[%s142 + $0x13c] sm:$0xf]
        %v226 = vld [vmem:[%s142 + $0x140] sm:$0xf]
        %v227 = vld [vmem:[%s142 + $0x144] sm:$0xf]
        %v228 = vld [vmem:[%s142 + $0x148] sm:$0xf]
        %v229 = vld [vmem:[%s142 + $0x14c] sm:$0xf]
        %v230 = vld [vmem:[%s142 + $0x150] sm:$0xf]
        %v231 = vld [vmem:[%s142 + $0x154] sm:$0xf]
        %v232 = vld [vmem:[%s142 + $0x158] sm:$0xf]
        %v233 = vld [vmem:[%s142 + $0x15c] sm:$0xf]
        %v234 = vld [vmem:[%s142 + $0x160] sm:$0xf]
        %v235 = vld [vmem:[%s142 + $0x164] sm:$0xf]
        %v236 = vld [vmem:[%s142 + $0x168] sm:$0xf]
        %v237 = vld [vmem:[%s142 + $0x16c] sm:$0xf]
        %v238 = vld [vmem:[%s142 + $0x170] sm:$0xf]
        %v239 = vld [vmem:[%s142 + $0x174] sm:$0xf]
        %v240 = vld [vmem:[%s142 + $0x178] sm:$0xf]
        %v241 = vld [vmem:[%s142 + $0x17c] sm:$0xf]
        %v242 = vld [vmem:[%s142 + $0x180] sm:$0xf]
        %v243 = vld [vmem:[%s142 + $0x184] sm:$0xf]
        %v244 = vld [vmem:[%s142 + $0x188] sm:$0xf]
        %v245 = vld [vmem:[%s142 + $0x18c] sm:$0xf]
        %v246 = vld [vmem:[%s142 + $0x190] sm:$0xf]
        %v247 = vld [vmem:[%s142 + $0x194] sm:$0xf]
        %v248 = vld [vmem:[%s142 + $0x198] sm:$0xf]
        %v249 = vld [vmem:[%s142 + $0x19c] sm:$0xf]
        %v250 = vld [vmem:[%s142 + $0x1a0] sm:$0xf]
        %v251 = vld [vmem:[%s142 + $0x1a4] sm:$0xf]
        %v252 = vld [vmem:[%s142 + $0x1a8] sm:$0xf]
        %v253 = vld [vmem:[%s142 + $0x1ac] sm:$0xf]
        %v254 = vld [vmem:[%s142 + $0x1b0] sm:$0xf]
        %v255 = vld [vmem:[%s142 + $0x1b4] sm:$0xf]
        %v256 = vld [vmem:[%s142 + $0x1b8] sm:$0xf]
        %v257 = vld [vmem:[%s142 + $0x1bc] sm:$0xf]
        %v258 = vld [vmem:[%s142 + $0x1c0] sm:$0xf]
        %v259 = vld [vmem:[%s142 + $0x1c4] sm:$0xf]
        %v260 = vld [vmem:[%s142 + $0x1c8] sm:$0xf]
        %v261 = vld [vmem:[%s142 + $0x1cc] sm:$0xf]
        %v262 = vld [vmem:[%s142 + $0x1d0] sm:$0xf]
        %v263 = vld [vmem:[%s142 + $0x1d4] sm:$0xf]
        %v264 = vld [vmem:[%s142 + $0x1d8] sm:$0xf]
        %v265 = vld [vmem:[%s142 + $0x1dc] sm:$0xf]
        %v266 = vld [vmem:[%s142 + $0x1e0] sm:$0xf]
        %v267 = vld [vmem:[%s142 + $0x1e4] sm:$0xf]
        %v268 = vld [vmem:[%s142 + $0x1e8] sm:$0xf]
        %v269 = vld [vmem:[%s142 + $0x1ec] sm:$0xf]
        %v270 = vld [vmem:[%s142 + $0x1f0] sm:$0xf]
        %v271 = vld [vmem:[%s142 + $0x1f4] sm:$0xf]
        %v272 = vld [vmem:[%s142 + $0x1f8] sm:$0xf]
        %v273 = vld [vmem:[%s142 + $0x1fc] sm:$0xf]
        %v274 = vld [vmem:[%s142 + $0x200] sm:$0xf]
        %v275 = vld [vmem:[%s142 + $0x204] sm:$0xf]
        %v276 = vld [vmem:[%s142 + $0x208] sm:$0xf]
        %v277 = vld [vmem:[%s142 + $0x20c] sm:$0xf]
        %v278 = vld [vmem:[%s142 + $0x210] sm:$0xf]
        %v279 = vld [vmem:[%s142 + $0x214] sm:$0xf]
        %v280 = vld [vmem:[%s142 + $0x218] sm:$0xf]
        %v281 = vld [vmem:[%s142 + $0x21c] sm:$0xf]
        %v282 = vld [vmem:[%s142 + $0x220] sm:$0xf]
        %v283 = vld [vmem:[%s142 + $0x224] sm:$0xf]
        %v284 = vld [vmem:[%s142 + $0x228] sm:$0xf]
        %v285 = vld [vmem:[%s142 + $0x22c] sm:$0xf]
        %v286 = vld [vmem:[%s142 + $0x230] sm:$0xf]
        %v287 = vld [vmem:[%s142 + $0x234] sm:$0xf]
        %v288 = vld [vmem:[%s142 + $0x238] sm:$0xf]
        %v289 = vld [vmem:[%s142 + $0x23c] sm:$0xf]
        %v290 = vld [vmem:[%s142 + $0x240] sm:$0xf]
        %v291 = vld [vmem:[%s142 + $0x244] sm:$0xf]
        %v292 = vld [vmem:[%s142 + $0x248] sm:$0xf]
        %v293 = vld [vmem:[%s142 + $0x24c] sm:$0xf]
        %v294 = vld [vmem:[%s142 + $0x250] sm:$0xf]
        %v295 = vld [vmem:[%s142 + $0x254] sm:$0xf]
        %v296 = vld [vmem:[%s142 + $0x258] sm:$0xf]
        %v297 = vld [vmem:[%s142 + $0x25c] sm:$0xf]
        %v298 = vld [vmem:[%s142 + $0x260] sm:$0xf]
        %v299 = vld [vmem:[%s142 + $0x264] sm:$0xf]
        %v300 = vld [vmem:[%s142 + $0x268] sm:$0xf]
        %v301 = vld [vmem:[%s142 + $0x26c] sm:$0xf]
        %v302 = vld [vmem:[%s142 + $0x270] sm:$0xf]
        %v303 = vld [vmem:[%s142 + $0x274] sm:$0xf]
        %v304 = vld [vmem:[%s142 + $0x278] sm:$0xf]
        %v305 = vld [vmem:[%s142 + $0x27c] sm:$0xf]
        %v306 = vld [vmem:[%s142 + $0x280] sm:$0xf]
        %v307 = vld [vmem:[%s142 + $0x284] sm:$0xf]
        %v308 = vld [vmem:[%s142 + $0x288] sm:$0xf]
        %v309 = vld [vmem:[%s142 + $0x28c] sm:$0xf]
        %v310 = vld [vmem:[%s142 + $0x290] sm:$0xf]
        %v311 = vld [vmem:[%s142 + $0x294] sm:$0xf]
        %v312 = vld [vmem:[%s142 + $0x298] sm:$0xf]
        %v313 = vld [vmem:[%s142 + $0x29c] sm:$0xf]
        %v314 = vld [vmem:[%s142 + $0x2a0] sm:$0xf]
        %v315 = vld [vmem:[%s142 + $0x2a4] sm:$0xf]
        %v316 = vld [vmem:[%s142 + $0x2a8] sm:$0xf]
        %v317 = vld [vmem:[%s142 + $0x2ac] sm:$0xf]
        %v318 = vld [vmem:[%s142 + $0x2b0] sm:$0xf]
        %v319 = vld [vmem:[%s142 + $0x2b4] sm:$0xf]
        %v320 = vld [vmem:[%s142 + $0x2b8] sm:$0xf]
        %v321 = vld [vmem:[%s142 + $0x2bc] sm:$0xf]
        %v322 = vld [vmem:[%s142 + $0x2c0] sm:$0xf]
        %v323 = vld [vmem:[%s142 + $0x2c4] sm:$0xf]
        %v324 = vld [vmem:[%s142 + $0x2c8] sm:$0xf]
        %v325 = vld [vmem:[%s142 + $0x2cc] sm:$0xf]
        %v326 = vld [vmem:[%s142 + $0x2d0] sm:$0xf]
        %v327 = vld [vmem:[%s142 + $0x2d4] sm:$0xf]
        %v328 = vld [vmem:[%s142 + $0x2d8] sm:$0xf]
        %v329 = vld [vmem:[%s142 + $0x2dc] sm:$0xf]
        %v330 = vld [vmem:[%s142 + $0x2e0] sm:$0xf]
        %v331 = vld [vmem:[%s142 + $0x2e4] sm:$0xf]
        %v332 = vld [vmem:[%s142 + $0x2e8] sm:$0xf]
        %v333 = vld [vmem:[%s142 + $0x2ec] sm:$0xf]
        %v334 = vld [vmem:[%s142 + $0x2f0] sm:$0xf]
        %v335 = vld [vmem:[%s142 + $0x2f4] sm:$0xf]
        %v336 = vld [vmem:[%s142 + $0x2f8] sm:$0xf]
        %v337 = vld [vmem:[%s142 + $0x2fc] sm:$0xf]
        %v338 = vld [vmem:[%s142 + $0x300] sm:$0xf]
        %v339 = vld [vmem:[%s142 + $0x304] sm:$0xf]
        %v340 = vld [vmem:[%s142 + $0x308] sm:$0xf]
        %v341 = vld [vmem:[%s142 + $0x30c] sm:$0xf]
        %v342 = vld [vmem:[%s142 + $0x310] sm:$0xf]
        %v343 = vld [vmem:[%s142 + $0x314] sm:$0xf]
        %v344 = vld [vmem:[%s142 + $0x318] sm:$0xf]
        %v345 = vld [vmem:[%s142 + $0x31c] sm:$0xf]
        %v346 = vld [vmem:[%s142 + $0x320] sm:$0xf]
        %v347 = vld [vmem:[%s142 + $0x324] sm:$0xf]
        %v348 = vld [vmem:[%s142 + $0x328] sm:$0xf]
        %v349 = vld [vmem:[%s142 + $0x32c] sm:$0xf]
        %v350 = vld [vmem:[%s142 + $0x330] sm:$0xf]
        %v351 = vld [vmem:[%s142 + $0x334] sm:$0xf]
        %v352 = vld [vmem:[%s142 + $0x338] sm:$0xf]
        %v353 = vld [vmem:[%s142 + $0x33c] sm:$0xf]
        %v354 = vld [vmem:[%s142 + $0x340] sm:$0xf]
        %v355 = vld [vmem:[%s142 + $0x344] sm:$0xf]
        %v356 = vld [vmem:[%s142 + $0x348] sm:$0xf]
        %v357 = vld [vmem:[%s142 + $0x34c] sm:$0xf]
        %v358 = vld [vmem:[%s142 + $0x350] sm:$0xf]
        %v359 = vld [vmem:[%s142 + $0x354] sm:$0xf]
        %v360 = vld [vmem:[%s142 + $0x358] sm:$0xf]
        %v361 = vld [vmem:[%s142 + $0x35c] sm:$0xf]
        %v362 = vld [vmem:[%s142 + $0x360] sm:$0xf]
        %v363 = vld [vmem:[%s142 + $0x364] sm:$0xf]
        %v364 = vld [vmem:[%s142 + $0x368] sm:$0xf]
        %v365 = vld [vmem:[%s142 + $0x36c] sm:$0xf]
        %v366 = vld [vmem:[%s142 + $0x370] sm:$0xf]
        %v367 = vld [vmem:[%s142 + $0x374] sm:$0xf]
        %v368 = vld [vmem:[%s142 + $0x378] sm:$0xf]
        %v369 = vld [vmem:[%s142 + $0x37c] sm:$0xf]
        %v370 = vld [vmem:[%s142 + $0x380] sm:$0xf]
        %v371 = vld [vmem:[%s142 + $0x384] sm:$0xf]
        %v372 = vld [vmem:[%s142 + $0x388] sm:$0xf]
        %v373 = vld [vmem:[%s142 + $0x38c] sm:$0xf]
        %v374 = vld [vmem:[%s142 + $0x390] sm:$0xf]
        %v375 = vld [vmem:[%s142 + $0x394] sm:$0xf]
        %v376 = vld [vmem:[%s142 + $0x398] sm:$0xf]
        %v377 = vld [vmem:[%s142 + $0x39c] sm:$0xf]
        %v378 = vld [vmem:[%s142 + $0x3a0] sm:$0xf]
        %v379 = vld [vmem:[%s142 + $0x3a4] sm:$0xf]
        %v380 = vld [vmem:[%s142 + $0x3a8] sm:$0xf]
        %v381 = vld [vmem:[%s142 + $0x3ac] sm:$0xf]
        %v382 = vld [vmem:[%s142 + $0x3b0] sm:$0xf]
        %v383 = vld [vmem:[%s142 + $0x3b4] sm:$0xf]
        %v384 = vld [vmem:[%s142 + $0x3b8] sm:$0xf]
        %v385 = vld [vmem:[%s142 + $0x3bc] sm:$0xf]
        %v386 = vld [vmem:[%s142 + $0x3c0] sm:$0xf]
        %v387 = vld [vmem:[%s142 + $0x3c4] sm:$0xf]
        %v388 = vld [vmem:[%s142 + $0x3c8] sm:$0xf]
        %v389 = vld [vmem:[%s142 + $0x3cc] sm:$0xf]
        %v390 = vld [vmem:[%s142 + $0x3d0] sm:$0xf]
        %v391 = vld [vmem:[%s142 + $0x3d4] sm:$0xf]
        %v392 = vld [vmem:[%s142 + $0x3d8] sm:$0xf]
        %v393 = vld [vmem:[%s142 + $0x3dc] sm:$0xf]
        %v394 = vld [vmem:[%s142 + $0x3e0] sm:$0xf]
        %v395 = vld [vmem:[%s142 + $0x3e4] sm:$0xf]
        %v396 = vld [vmem:[%s142 + $0x3e8] sm:$0xf]
        %v397 = vld [vmem:[%s142 + $0x3ec] sm:$0xf]
        %v398 = vld [vmem:[%s142 + $0x3f0] sm:$0xf]
        %v399 = vld [vmem:[%s142 + $0x3f4] sm:$0xf]
        %v400 = vld [vmem:[%s142 + $0x3f8] sm:$0xf]
        %v401 = vld [vmem:[%s142 + $0x3fc] sm:$0xf]
        %v402 = vld [vmem:[%s142 + $0x400] sm:$0xf]
        %v403 = vld [vmem:[%s142 + $0x404] sm:$0xf]
        %v404 = vld [vmem:[%s142 + $0x408] sm:$0xf]
        %v405 = vld [vmem:[%s142 + $0x40c] sm:$0xf]
        %v406 = vld [vmem:[%s142 + $0x410] sm:$0xf]
        %v407 = vld [vmem:[%s142 + $0x414] sm:$0xf]
        %v408 = vld [vmem:[%s142 + $0x418] sm:$0xf]
        %v409 = vld [vmem:[%s142 + $0x41c] sm:$0xf]
        %v410 = vld [vmem:[%s142 + $0x420] sm:$0xf]
        %v411 = vld [vmem:[%s142 + $0x424] sm:$0xf]
        %v412 = vld [vmem:[%s142 + $0x428] sm:$0xf]
        %v413 = vld [vmem:[%s142 + $0x42c] sm:$0xf]
        %v414 = vld [vmem:[%s142 + $0x430] sm:$0xf]
        %v415 = vld [vmem:[%s142 + $0x434] sm:$0xf]
        %v416 = vld [vmem:[%s142 + $0x438] sm:$0xf]
        %v417 = vld [vmem:[%s142 + $0x43c] sm:$0xf]
        %v418 = vld [vmem:[%s142 + $0x440] sm:$0xf]
        %v419 = vld [vmem:[%s142 + $0x444] sm:$0xf]
        %v420 = vld [vmem:[%s142 + $0x448] sm:$0xf]
        %v421 = vld [vmem:[%s142 + $0x44c] sm:$0xf]
        %v422 = vld [vmem:[%s142 + $0x450] sm:$0xf]
        %v423 = vld [vmem:[%s142 + $0x454] sm:$0xf]
        %v424 = vld [vmem:[%s142 + $0x458] sm:$0xf]
        %v425 = vld [vmem:[%s142 + $0x45c] sm:$0xf]
        %v426 = vld [vmem:[%s142 + $0x460] sm:$0xf]
        %v427 = vld [vmem:[%s142 + $0x464] sm:$0xf]
        %v428 = vld [vmem:[%s142 + $0x468] sm:$0xf]
        %v429 = vld [vmem:[%s142 + $0x46c] sm:$0xf]
        %v430 = vld [vmem:[%s142 + $0x470] sm:$0xf]
        %v431 = vld [vmem:[%s142 + $0x474] sm:$0xf]
        %v432 = vld [vmem:[%s142 + $0x478] sm:$0xf]
        %v433 = vld [vmem:[%s142 + $0x47c] sm:$0xf]
        %v434 = vld [vmem:[%s142 + $0x480] sm:$0xf]
        %v435 = vld [vmem:[%s142 + $0x484] sm:$0xf]
        %v436 = vld [vmem:[%s142 + $0x488] sm:$0xf]
        %v437 = vld [vmem:[%s142 + $0x48c] sm:$0xf]
        %v438 = vld [vmem:[%s142 + $0x490] sm:$0xf]
        %v439 = vld [vmem:[%s142 + $0x494] sm:$0xf]
        %v440 = vld [vmem:[%s142 + $0x498] sm:$0xf]
        %v441 = vld [vmem:[%s142 + $0x49c] sm:$0xf]
        %v442 = vld [vmem:[%s142 + $0x4a0] sm:$0xf]
        %v443 = vld [vmem:[%s142 + $0x4a4] sm:$0xf]
        %v444 = vld [vmem:[%s142 + $0x4a8] sm:$0xf]
        %v445 = vld [vmem:[%s142 + $0x4ac] sm:$0xf]
        %v446 = vld [vmem:[%s142 + $0x4b0] sm:$0xf]
        %v447 = vld [vmem:[%s142 + $0x4b4] sm:$0xf]
        %v448 = vld [vmem:[%s142 + $0x4b8] sm:$0xf]
        %v449 = vld [vmem:[%s142 + $0x4bc] sm:$0xf]
        %v450 = vld [vmem:[%s142 + $0x4c0] sm:$0xf]
        %v451 = vld [vmem:[%s142 + $0x4c4] sm:$0xf]
        %v452 = vld [vmem:[%s142 + $0x4c8] sm:$0xf]
        %v453 = vld [vmem:[%s142 + $0x4cc] sm:$0xf]
        %v454 = vld [vmem:[%s142 + $0x4d0] sm:$0xf]
        %v455 = vld [vmem:[%s142 + $0x4d4] sm:$0xf]
        %v456 = vld [vmem:[%s142 + $0x4d8] sm:$0xf]
        %v457 = vld [vmem:[%s142 + $0x4dc] sm:$0xf]
        %v458 = vld [vmem:[%s142 + $0x4e0] sm:$0xf]
        %v459 = vld [vmem:[%s142 + $0x4e4] sm:$0xf]
        %v460 = vld [vmem:[%s142 + $0x4e8] sm:$0xf]
        %v461 = vld [vmem:[%s142 + $0x4ec] sm:$0xf]
        %v462 = vld [vmem:[%s142 + $0x4f0] sm:$0xf]
        %v463 = vld [vmem:[%s142 + $0x4f4] sm:$0xf]
        %v464 = vld [vmem:[%s142 + $0x4f8] sm:$0xf]
        %v465 = vld [vmem:[%s142 + $0x4fc] sm:$0xf]
        %v466 = vld [vmem:[%s142 + $0x500] sm:$0xf]
        %v467 = vld [vmem:[%s142 + $0x504] sm:$0xf]
        %v468 = vld [vmem:[%s142 + $0x508] sm:$0xf]
        %v469 = vld [vmem:[%s142 + $0x50c] sm:$0xf]
        %v470 = vld [vmem:[%s142 + $0x510] sm:$0xf]
        %v471 = vld [vmem:[%s142 + $0x514] sm:$0xf]
        %v472 = vld [vmem:[%s142 + $0x518] sm:$0xf]
        %v473 = vld [vmem:[%s142 + $0x51c] sm:$0xf]
        %v474 = vld [vmem:[%s142 + $0x520] sm:$0xf]
        %v475 = vld [vmem:[%s142 + $0x524] sm:$0xf]
        %v476 = vld [vmem:[%s142 + $0x528] sm:$0xf]
        %v477 = vld [vmem:[%s142 + $0x52c] sm:$0xf]
        %v478 = vld [vmem:[%s142 + $0x530] sm:$0xf]
        %v479 = vld [vmem:[%s142 + $0x534] sm:$0xf]
        %v480 = vld [vmem:[%s142 + $0x538] sm:$0xf]
        %v481 = vld [vmem:[%s142 + $0x53c] sm:$0xf]
        %v482 = vld [vmem:[%s142 + $0x540] sm:$0xf]
        %v483 = vld [vmem:[%s142 + $0x544] sm:$0xf]
        %v484 = vld [vmem:[%s142 + $0x548] sm:$0xf]
        %v485 = vld [vmem:[%s142 + $0x54c] sm:$0xf]
        %v486 = vld [vmem:[%s142 + $0x550] sm:$0xf]
        %v487 = vld [vmem:[%s142 + $0x554] sm:$0xf]
        %v488 = vld [vmem:[%s142 + $0x558] sm:$0xf]
        %v489 = vld [vmem:[%s142 + $0x55c] sm:$0xf]
        %v490 = vld [vmem:[%s142 + $0x560] sm:$0xf]
        %v491 = vld [vmem:[%s142 + $0x564] sm:$0xf]
        %v492 = vld [vmem:[%s142 + $0x568] sm:$0xf]
        %v493 = vld [vmem:[%s142 + $0x56c] sm:$0xf]
        %v494 = vld [vmem:[%s142 + $0x570] sm:$0xf]
        %v495 = vld [vmem:[%s142 + $0x574] sm:$0xf]
        %v496 = vld [vmem:[%s142 + $0x578] sm:$0xf]
        %v497 = vld [vmem:[%s142 + $0x57c] sm:$0xf]
        %v498 = vld [vmem:[%s142 + $0x580] sm:$0xf]
        %v499 = vld [vmem:[%s142 + $0x584] sm:$0xf]
        %v500 = vld [vmem:[%s142 + $0x588] sm:$0xf]
        %v501 = vld [vmem:[%s142 + $0x58c] sm:$0xf]
        %v502 = vld [vmem:[%s142 + $0x590] sm:$0xf]
        %v503 = vld [vmem:[%s142 + $0x594] sm:$0xf]
        %v504 = vld [vmem:[%s142 + $0x598] sm:$0xf]
        %v505 = vld [vmem:[%s142 + $0x59c] sm:$0xf]
        %v506 = vld [vmem:[%s142 + $0x5a0] sm:$0xf]
        %v507 = vld [vmem:[%s142 + $0x5a4] sm:$0xf]
        %v508 = vld [vmem:[%s142 + $0x5a8] sm:$0xf]
        %v509 = vld [vmem:[%s142 + $0x5ac] sm:$0xf]
        %v510 = vld [vmem:[%s142 + $0x5b0] sm:$0xf]
        %v511 = vld [vmem:[%s142 + $0x5b4] sm:$0xf]
        %v512 = vld [vmem:[%s142 + $0x5b8] sm:$0xf]
        %v513 = vld [vmem:[%s142 + $0x5bc] sm:$0xf]
        %v514 = vld [vmem:[%s142 + $0x5c0] sm:$0xf]
        %v515 = vld [vmem:[%s142 + $0x5c4] sm:$0xf]
        %v516 = vld [vmem:[%s142 + $0x5c8] sm:$0xf]
        %v517 = vld [vmem:[%s142 + $0x5cc] sm:$0xf]
        %v518 = vld [vmem:[%s142 + $0x5d0] sm:$0xf]
        %v519 = vld [vmem:[%s142 + $0x5d4] sm:$0xf]
        %v520 = vld [vmem:[%s142 + $0x5d8] sm:$0xf]
        %v521 = vld [vmem:[%s142 + $0x5dc] sm:$0xf]
        %v522 = vld [vmem:[%s142 + $0x5e0] sm:$0xf]
        %v523 = vld [vmem:[%s142 + $0x5e4] sm:$0xf]
        %v524 = vld [vmem:[%s142 + $0x5e8] sm:$0xf]
        %v525 = vld [vmem:[%s142 + $0x5ec] sm:$0xf]
        %v526 = vld [vmem:[%s142 + $0x5f0] sm:$0xf]
        %v527 = vld [vmem:[%s142 + $0x5f4] sm:$0xf]
        %v528 = vld [vmem:[%s142 + $0x5f8] sm:$0xf]
        %v529 = vld [vmem:[%s142 + $0x5fc] sm:$0xf]
        %v530 = vld [vmem:[%s142 + $0x600] sm:$0xf]
        %v531 = vld [vmem:[%s142 + $0x604] sm:$0xf]
        %v532 = vld [vmem:[%s142 + $0x608] sm:$0xf]
        %v533 = vld [vmem:[%s142 + $0x60c] sm:$0xf]
        %v534 = vld [vmem:[%s142 + $0x610] sm:$0xf]
        %v535 = vld [vmem:[%s142 + $0x614] sm:$0xf]
        %v536 = vld [vmem:[%s142 + $0x618] sm:$0xf]
        %v537 = vld [vmem:[%s142 + $0x61c] sm:$0xf]
        %v538 = vld [vmem:[%s142 + $0x620] sm:$0xf]
        %v539 = vld [vmem:[%s142 + $0x624] sm:$0xf]
        %v540 = vld [vmem:[%s142 + $0x628] sm:$0xf]
        %v541 = vld [vmem:[%s142 + $0x62c] sm:$0xf]
        %v542 = vld [vmem:[%s142 + $0x630] sm:$0xf]
        %v543 = vld [vmem:[%s142 + $0x634] sm:$0xf]
        %v544 = vld [vmem:[%s142 + $0x638] sm:$0xf]
        %v545 = vld [vmem:[%s142 + $0x63c] sm:$0xf]
        %v546 = vld [vmem:[%s142 + $0x640] sm:$0xf]
        %v547 = vld [vmem:[%s142 + $0x644] sm:$0xf]
        %v548 = vld [vmem:[%s142 + $0x648] sm:$0xf]
        %v549 = vld [vmem:[%s142 + $0x64c] sm:$0xf]
        %v550 = vld [vmem:[%s142 + $0x650] sm:$0xf]
        %v551 = vld [vmem:[%s142 + $0x654] sm:$0xf]
        %v552 = vld [vmem:[%s142 + $0x658] sm:$0xf]
        %v553 = vld [vmem:[%s142 + $0x65c] sm:$0xf]
        %v554 = vld [vmem:[%s142 + $0x660] sm:$0xf]
        %v555 = vld [vmem:[%s142 + $0x664] sm:$0xf]
        %v556 = vld [vmem:[%s142 + $0x668] sm:$0xf]
        %v557 = vld [vmem:[%s142 + $0x66c] sm:$0xf]
        %v558 = vld [vmem:[%s142 + $0x670] sm:$0xf]
        %v559 = vld [vmem:[%s142 + $0x674] sm:$0xf]
        %v560 = vld [vmem:[%s142 + $0x678] sm:$0xf]
        %v561 = vld [vmem:[%s142 + $0x67c] sm:$0xf]
        %v562 = vld [vmem:[%s142 + $0x680] sm:$0xf]
        %v563 = vld [vmem:[%s142 + $0x684] sm:$0xf]
        %v564 = vld [vmem:[%s142 + $0x688] sm:$0xf]
        %v565 = vld [vmem:[%s142 + $0x68c] sm:$0xf]
        %v566 = vld [vmem:[%s142 + $0x690] sm:$0xf]
        %v567 = vld [vmem:[%s142 + $0x694] sm:$0xf]
        %v568 = vld [vmem:[%s142 + $0x698] sm:$0xf]
        %v569 = vld [vmem:[%s142 + $0x69c] sm:$0xf]
        %v570 = vld [vmem:[%s142 + $0x6a0] sm:$0xf]
        %v571 = vld [vmem:[%s142 + $0x6a4] sm:$0xf]
        %v572 = vld [vmem:[%s142 + $0x6a8] sm:$0xf]
        %v573 = vld [vmem:[%s142 + $0x6ac] sm:$0xf]
        %v574 = vld [vmem:[%s142 + $0x6b0] sm:$0xf]
        %v575 = vld [vmem:[%s142 + $0x6b4] sm:$0xf]
        %v576 = vld [vmem:[%s142 + $0x6b8] sm:$0xf]
        %v577 = vld [vmem:[%s142 + $0x6bc] sm:$0xf]
        %v578 = vld [vmem:[%s142 + $0x6c0] sm:$0xf]
        %v579 = vld [vmem:[%s142 + $0x6c4] sm:$0xf]
        %v580 = vld [vmem:[%s142 + $0x6c8] sm:$0xf]
        %v581 = vld [vmem:[%s142 + $0x6cc] sm:$0xf]
        %v582 = vld [vmem:[%s142 + $0x6d0] sm:$0xf]
        %v583 = vld [vmem:[%s142 + $0x6d4] sm:$0xf]
        %v584 = vld [vmem:[%s142 + $0x6d8] sm:$0xf]
        %v585 = vld [vmem:[%s142 + $0x6dc] sm:$0xf]
        %v586 = vld [vmem:[%s142 + $0x6e0] sm:$0xf]
        %v587 = vld [vmem:[%s142 + $0x6e4] sm:$0xf]
        %v588 = vld [vmem:[%s142 + $0x6e8] sm:$0xf]
        %v589 = vld [vmem:[%s142 + $0x6ec] sm:$0xf]
        %v590 = vld [vmem:[%s142 + $0x6f0] sm:$0xf]
        %v591 = vld [vmem:[%s142 + $0x6f4] sm:$0xf]
        %v592 = vld [vmem:[%s142 + $0x6f8] sm:$0xf]
        %v593 = vld [vmem:[%s142 + $0x6fc] sm:$0xf]
        %v594 = vld [vmem:[%s142 + $0x700] sm:$0xf]
        %v595 = vld [vmem:[%s142 + $0x704] sm:$0xf]
        %v596 = vld [vmem:[%s142 + $0x708] sm:$0xf]
        %v597 = vld [vmem:[%s142 + $0x70c] sm:$0xf]
        %v598 = vld [vmem:[%s142 + $0x710] sm:$0xf]
        %v599 = vld [vmem:[%s142 + $0x714] sm:$0xf]
        %v600 = vld [vmem:[%s142 + $0x718] sm:$0xf]
        %v601 = vld [vmem:[%s142 + $0x71c] sm:$0xf]
        %v602 = vld [vmem:[%s142 + $0x720] sm:$0xf]
        %v603 = vld [vmem:[%s142 + $0x724] sm:$0xf]
        %v604 = vld [vmem:[%s142 + $0x728] sm:$0xf]
        %v605 = vld [vmem:[%s142 + $0x72c] sm:$0xf]
        %v606 = vld [vmem:[%s142 + $0x730] sm:$0xf]
        %v607 = vld [vmem:[%s142 + $0x734] sm:$0xf]
        %v608 = vld [vmem:[%s142 + $0x738] sm:$0xf]
        %v609 = vld [vmem:[%s142 + $0x73c] sm:$0xf]
        %v610 = vld [vmem:[%s142 + $0x740] sm:$0xf]
        %v611 = vld [vmem:[%s142 + $0x744] sm:$0xf]
        %v612 = vld [vmem:[%s142 + $0x748] sm:$0xf]
        %v613 = vld [vmem:[%s142 + $0x74c] sm:$0xf]
        %v614 = vld [vmem:[%s142 + $0x750] sm:$0xf]
        %v615 = vld [vmem:[%s142 + $0x754] sm:$0xf]
        %v616 = vld [vmem:[%s142 + $0x758] sm:$0xf]
        %v617 = vld [vmem:[%s142 + $0x75c] sm:$0xf]
        %v618 = vld [vmem:[%s142 + $0x760] sm:$0xf]
        %v619 = vld [vmem:[%s142 + $0x764] sm:$0xf]
        %v620 = vld [vmem:[%s142 + $0x768] sm:$0xf]
        %v621 = vld [vmem:[%s142 + $0x76c] sm:$0xf]
        %v622 = vld [vmem:[%s142 + $0x770] sm:$0xf]
        %v623 = vld [vmem:[%s142 + $0x774] sm:$0xf]
        %v624 = vld [vmem:[%s142 + $0x778] sm:$0xf]
        %v625 = vld [vmem:[%s142 + $0x77c] sm:$0xf]
        %v626 = vld [vmem:[%s142 + $0x780] sm:$0xf]
        %v627 = vld [vmem:[%s142 + $0x784] sm:$0xf]
        %v628 = vld [vmem:[%s142 + $0x788] sm:$0xf]
        %v629 = vld [vmem:[%s142 + $0x78c] sm:$0xf]
        %v630 = vld [vmem:[%s142 + $0x790] sm:$0xf]
        %v631 = vld [vmem:[%s142 + $0x794] sm:$0xf]
        %v632 = vld [vmem:[%s142 + $0x798] sm:$0xf]
        %v633 = vld [vmem:[%s142 + $0x79c] sm:$0xf]
        %v634 = vld [vmem:[%s142 + $0x7a0] sm:$0xf]
        %v635 = vld [vmem:[%s142 + $0x7a4] sm:$0xf]
        %v636 = vld [vmem:[%s142 + $0x7a8] sm:$0xf]
        %v637 = vld [vmem:[%s142 + $0x7ac] sm:$0xf]
        %v638 = vld [vmem:[%s142 + $0x7b0] sm:$0xf]
        %v639 = vld [vmem:[%s142 + $0x7b4] sm:$0xf]
        %v640 = vld [vmem:[%s142 + $0x7b8] sm:$0xf]
        %v641 = vld [vmem:[%s142 + $0x7bc] sm:$0xf]
        %v642 = vld [vmem:[%s142 + $0x7c0] sm:$0xf]
        %v643 = vld [vmem:[%s142 + $0x7c4] sm:$0xf]
        %v644 = vld [vmem:[%s142 + $0x7c8] sm:$0xf]
        %v645 = vld [vmem:[%s142 + $0x7cc] sm:$0xf]
        %v646 = vld [vmem:[%s142 + $0x7d0] sm:$0xf]
        %v647 = vld [vmem:[%s142 + $0x7d4] sm:$0xf]
        %v648 = vld [vmem:[%s142 + $0x7d8] sm:$0xf]
        %v649 = vld [vmem:[%s142 + $0x7dc] sm:$0xf]
        %v650 = vld [vmem:[%s142 + $0x7e0] sm:$0xf]
        %v651 = vld [vmem:[%s142 + $0x7e4] sm:$0xf]
        %v652 = vld [vmem:[%s142 + $0x7e8] sm:$0xf]
        %v653 = vld [vmem:[%s142 + $0x7ec] sm:$0xf]
        %v654 = vld [vmem:[%s142 + $0x7f0] sm:$0xf]
        %v655 = vld [vmem:[%s142 + $0x7f4] sm:$0xf]
        %v656 = vld [vmem:[%s142 + $0x7f8] sm:$0xf]
        %v657 = vld [vmem:[%s142 + $0x7fc] sm:$0xf]
        %v1170 = vunpack.c.l.b16 %v146
        %v1171 = vunpack.c.l.b16 %v147
        %v1172 = vunpack.c.l.b16 %v148
        %v1173 = vunpack.c.l.b16 %v149
        %v1174 = vunpack.c.l.b16 %v150
        %v1175 = vunpack.c.l.b16 %v151
        %v1176 = vunpack.c.l.b16 %v152
        %v1177 = vunpack.c.l.b16 %v153
        %v1178 = vunpack.c.l.b16 %v154
        %v1179 = vunpack.c.l.b16 %v155
        %v1180 = vunpack.c.l.b16 %v156
        %v1181 = vunpack.c.l.b16 %v157
        %v1182 = vunpack.c.l.b16 %v158
        %v1183 = vunpack.c.l.b16 %v159
        %v1184 = vunpack.c.l.b16 %v160
        %v1185 = vunpack.c.l.b16 %v161
        %v1186 = vunpack.c.l.b16 %v162
        %v1187 = vunpack.c.l.b16 %v163
        %v1188 = vunpack.c.l.b16 %v164
        %v1189 = vunpack.c.l.b16 %v165
        %v1190 = vunpack.c.l.b16 %v166
        %v1191 = vunpack.c.l.b16 %v167
        %v1192 = vunpack.c.l.b16 %v168
        %v1193 = vunpack.c.l.b16 %v169
        %v1194 = vunpack.c.l.b16 %v170
        %v1195 = vunpack.c.l.b16 %v171
        %v1196 = vunpack.c.l.b16 %v172
        %v1197 = vunpack.c.l.b16 %v173
        %v1198 = vunpack.c.l.b16 %v174
        %v1199 = vunpack.c.l.b16 %v175
        %v1200 = vunpack.c.l.b16 %v176
        %v1201 = vunpack.c.l.b16 %v177
        %v1202 = vunpack.c.l.b16 %v178
        %v1203 = vunpack.c.l.b16 %v179
        %v1204 = vunpack.c.l.b16 %v180
        %v1205 = vunpack.c.l.b16 %v181
        %v1206 = vunpack.c.l.b16 %v182
        %v1207 = vunpack.c.l.b16 %v183
        %v1208 = vunpack.c.l.b16 %v184
        %v1209 = vunpack.c.l.b16 %v185
        %v1210 = vunpack.c.l.b16 %v186
        %v1211 = vunpack.c.l.b16 %v187
        %v1212 = vunpack.c.l.b16 %v188
        %v1213 = vunpack.c.l.b16 %v189
        %v1214 = vunpack.c.l.b16 %v190
        %v1215 = vunpack.c.l.b16 %v191
        %v1216 = vunpack.c.l.b16 %v192
        %v1217 = vunpack.c.l.b16 %v193
        %v1218 = vunpack.c.l.b16 %v194
        %v1219 = vunpack.c.l.b16 %v195
        %v1220 = vunpack.c.l.b16 %v196
        %v1221 = vunpack.c.l.b16 %v197
        %v1222 = vunpack.c.l.b16 %v198
        %v1223 = vunpack.c.l.b16 %v199
        %v1224 = vunpack.c.l.b16 %v200
        %v1225 = vunpack.c.l.b16 %v201
        %v1226 = vunpack.c.l.b16 %v202
        %v1227 = vunpack.c.l.b16 %v203
        %v1228 = vunpack.c.l.b16 %v204
        %v1229 = vunpack.c.l.b16 %v205
        %v1230 = vunpack.c.l.b16 %v206
        %v1231 = vunpack.c.l.b16 %v207
        %v1232 = vunpack.c.l.b16 %v208
        %v1233 = vunpack.c.l.b16 %v209
        %v1234 = vunpack.c.l.b16 %v210
        %v1235 = vunpack.c.l.b16 %v211
        %v1236 = vunpack.c.l.b16 %v212
        %v1237 = vunpack.c.l.b16 %v213
        %v1238 = vunpack.c.l.b16 %v214
        %v1239 = vunpack.c.l.b16 %v215
        %v1240 = vunpack.c.l.b16 %v216
        %v1241 = vunpack.c.l.b16 %v217
        %v1242 = vunpack.c.l.b16 %v218
        %v1243 = vunpack.c.l.b16 %v219
        %v1244 = vunpack.c.l.b16 %v220
        %v1245 = vunpack.c.l.b16 %v221
        %v1246 = vunpack.c.l.b16 %v222
        %v1247 = vunpack.c.l.b16 %v223
        %v1248 = vunpack.c.l.b16 %v224
        %v1249 = vunpack.c.l.b16 %v225
        %v1250 = vunpack.c.l.b16 %v226
        %v1251 = vunpack.c.l.b16 %v227
        %v1252 = vunpack.c.l.b16 %v228
        %v1253 = vunpack.c.l.b16 %v229
        %v1254 = vunpack.c.l.b16 %v230
        %v1255 = vunpack.c.l.b16 %v231
        %v1256 = vunpack.c.l.b16 %v232
        %v1257 = vunpack.c.l.b16 %v233
        %v1258 = vunpack.c.l.b16 %v234
        %v1259 = vunpack.c.l.b16 %v235
        %v1260 = vunpack.c.l.b16 %v236
        %v1261 = vunpack.c.l.b16 %v237
        %v1262 = vunpack.c.l.b16 %v238
        %v1263 = vunpack.c.l.b16 %v239
        %v1264 = vunpack.c.l.b16 %v240
        %v1265 = vunpack.c.l.b16 %v241
        %v1266 = vunpack.c.l.b16 %v242
        %v1267 = vunpack.c.l.b16 %v243
        %v1268 = vunpack.c.l.b16 %v244
        %v1269 = vunpack.c.l.b16 %v245
        %v1270 = vunpack.c.l.b16 %v246
        %v1271 = vunpack.c.l.b16 %v247
        %v1272 = vunpack.c.l.b16 %v248
        %v1273 = vunpack.c.l.b16 %v249
        %v1274 = vunpack.c.l.b16 %v250
        %v1275 = vunpack.c.l.b16 %v251
        %v1276 = vunpack.c.l.b16 %v252
        %v1277 = vunpack.c.l.b16 %v253
        %v1278 = vunpack.c.l.b16 %v254
        %v1279 = vunpack.c.l.b16 %v255
        %v1280 = vunpack.c.l.b16 %v256
        %v1281 = vunpack.c.l.b16 %v257
        %v1282 = vunpack.c.l.b16 %v258
        %v1283 = vunpack.c.l.b16 %v259
        %v1284 = vunpack.c.l.b16 %v260
        %v1285 = vunpack.c.l.b16 %v261
        %v1286 = vunpack.c.l.b16 %v262
        %v1287 = vunpack.c.l.b16 %v263
        %v1288 = vunpack.c.l.b16 %v264
        %v1289 = vunpack.c.l.b16 %v265
        %v1290 = vunpack.c.l.b16 %v266
        %v1291 = vunpack.c.l.b16 %v267
        %v1292 = vunpack.c.l.b16 %v268
        %v1293 = vunpack.c.l.b16 %v269
        %v1294 = vunpack.c.l.b16 %v270
        %v1295 = vunpack.c.l.b16 %v271
        %v1296 = vunpack.c.l.b16 %v272
        %v1297 = vunpack.c.l.b16 %v273
        %v1298 = vunpack.c.l.b16 %v274
        %v1299 = vunpack.c.l.b16 %v275
        %v1300 = vunpack.c.l.b16 %v276
        %v1301 = vunpack.c.l.b16 %v277
        %v1302 = vunpack.c.l.b16 %v278
        %v1303 = vunpack.c.l.b16 %v279
        %v1304 = vunpack.c.l.b16 %v280
        %v1305 = vunpack.c.l.b16 %v281
        %v1306 = vunpack.c.l.b16 %v282
        %v1307 = vunpack.c.l.b16 %v283
        %v1308 = vunpack.c.l.b16 %v284
        %v1309 = vunpack.c.l.b16 %v285
        %v1310 = vunpack.c.l.b16 %v286
        %v1311 = vunpack.c.l.b16 %v287
        %v1312 = vunpack.c.l.b16 %v288
        %v1313 = vunpack.c.l.b16 %v289
        %v1314 = vunpack.c.l.b16 %v290
        %v1315 = vunpack.c.l.b16 %v291
        %v1316 = vunpack.c.l.b16 %v292
        %v1317 = vunpack.c.l.b16 %v293
        %v1318 = vunpack.c.l.b16 %v294
        %v1319 = vunpack.c.l.b16 %v295
        %v1320 = vunpack.c.l.b16 %v296
        %v1321 = vunpack.c.l.b16 %v297
        %v1322 = vunpack.c.l.b16 %v298
        %v1323 = vunpack.c.l.b16 %v299
        %v1324 = vunpack.c.l.b16 %v300
        %v1325 = vunpack.c.l.b16 %v301
        %v1326 = vunpack.c.l.b16 %v302
        %v1327 = vunpack.c.l.b16 %v303
        %v1328 = vunpack.c.l.b16 %v304
        %v1329 = vunpack.c.l.b16 %v305
        %v1330 = vunpack.c.l.b16 %v306
        %v1331 = vunpack.c.l.b16 %v307
        %v1332 = vunpack.c.l.b16 %v308
        %v1333 = vunpack.c.l.b16 %v309
        %v1334 = vunpack.c.l.b16 %v310
        %v1335 = vunpack.c.l.b16 %v311
        %v1336 = vunpack.c.l.b16 %v312
        %v1337 = vunpack.c.l.b16 %v313
        %v1338 = vunpack.c.l.b16 %v314
        %v1339 = vunpack.c.l.b16 %v315
        %v1340 = vunpack.c.l.b16 %v316
        %v1341 = vunpack.c.l.b16 %v317
        %v1342 = vunpack.c.l.b16 %v318
        %v1343 = vunpack.c.l.b16 %v319
        %v1344 = vunpack.c.l.b16 %v320
        %v1345 = vunpack.c.l.b16 %v321
        %v1346 = vunpack.c.l.b16 %v322
        %v1347 = vunpack.c.l.b16 %v323
        %v1348 = vunpack.c.l.b16 %v324
        %v1349 = vunpack.c.l.b16 %v325
        %v1350 = vunpack.c.l.b16 %v326
        %v1351 = vunpack.c.l.b16 %v327
        %v1352 = vunpack.c.l.b16 %v328
        %v1353 = vunpack.c.l.b16 %v329
        %v1354 = vunpack.c.l.b16 %v330
        %v1355 = vunpack.c.l.b16 %v331
        %v1356 = vunpack.c.l.b16 %v332
        %v1357 = vunpack.c.l.b16 %v333
        %v1358 = vunpack.c.l.b16 %v334
        %v1359 = vunpack.c.l.b16 %v335
        %v1360 = vunpack.c.l.b16 %v336
        %v1361 = vunpack.c.l.b16 %v337
        %v1362 = vunpack.c.l.b16 %v338
        %v1363 = vunpack.c.l.b16 %v339
        %v1364 = vunpack.c.l.b16 %v340
        %v1365 = vunpack.c.l.b16 %v341
        %v1366 = vunpack.c.l.b16 %v342
        %v1367 = vunpack.c.l.b16 %v343
        %v1368 = vunpack.c.l.b16 %v344
        %v1369 = vunpack.c.l.b16 %v345
        %v1370 = vunpack.c.l.b16 %v346
        %v1371 = vunpack.c.l.b16 %v347
        %v1372 = vunpack.c.l.b16 %v348
        %v1373 = vunpack.c.l.b16 %v349
        %v1374 = vunpack.c.l.b16 %v350
        %v1375 = vunpack.c.l.b16 %v351
        %v1376 = vunpack.c.l.b16 %v352
        %v1377 = vunpack.c.l.b16 %v353
        %v1378 = vunpack.c.l.b16 %v354
        %v1379 = vunpack.c.l.b16 %v355
        %v1380 = vunpack.c.l.b16 %v356
        %v1381 = vunpack.c.l.b16 %v357
        %v1382 = vunpack.c.l.b16 %v358
        %v1383 = vunpack.c.l.b16 %v359
        %v1384 = vunpack.c.l.b16 %v360
        %v1385 = vunpack.c.l.b16 %v361
        %v1386 = vunpack.c.l.b16 %v362
        %v1387 = vunpack.c.l.b16 %v363
        %v1388 = vunpack.c.l.b16 %v364
        %v1389 = vunpack.c.l.b16 %v365
        %v1390 = vunpack.c.l.b16 %v366
        %v1391 = vunpack.c.l.b16 %v367
        %v1392 = vunpack.c.l.b16 %v368
        %v1393 = vunpack.c.l.b16 %v369
        %v1394 = vunpack.c.l.b16 %v370
        %v1395 = vunpack.c.l.b16 %v371
        %v1396 = vunpack.c.l.b16 %v372
        %v1397 = vunpack.c.l.b16 %v373
        %v1398 = vunpack.c.l.b16 %v374
        %v1399 = vunpack.c.l.b16 %v375
        %v1400 = vunpack.c.l.b16 %v376
        %v1401 = vunpack.c.l.b16 %v377
        %v1402 = vunpack.c.l.b16 %v378
        %v1403 = vunpack.c.l.b16 %v379
        %v1404 = vunpack.c.l.b16 %v380
        %v1405 = vunpack.c.l.b16 %v381
        %v1406 = vunpack.c.l.b16 %v382
        %v1407 = vunpack.c.l.b16 %v383
        %v1408 = vunpack.c.l.b16 %v384
        %v1409 = vunpack.c.l.b16 %v385
        %v1410 = vunpack.c.l.b16 %v386
        %v1411 = vunpack.c.l.b16 %v387
        %v1412 = vunpack.c.l.b16 %v388
        %v1413 = vunpack.c.l.b16 %v389
        %v1414 = vunpack.c.l.b16 %v390
        %v1415 = vunpack.c.l.b16 %v391
        %v1416 = vunpack.c.l.b16 %v392
        %v1417 = vunpack.c.l.b16 %v393
        %v1418 = vunpack.c.l.b16 %v394
        %v1419 = vunpack.c.l.b16 %v395
        %v1420 = vunpack.c.l.b16 %v396
        %v1421 = vunpack.c.l.b16 %v397
        %v1422 = vunpack.c.l.b16 %v398
        %v1423 = vunpack.c.l.b16 %v399
        %v1424 = vunpack.c.l.b16 %v400
        %v1425 = vunpack.c.l.b16 %v401
        %v1426 = vunpack.c.l.b16 %v402
        %v1427 = vunpack.c.l.b16 %v403
        %v1428 = vunpack.c.l.b16 %v404
        %v1429 = vunpack.c.l.b16 %v405
        %v1430 = vunpack.c.l.b16 %v406
        %v1431 = vunpack.c.l.b16 %v407
        %v1432 = vunpack.c.l.b16 %v408
        %v1433 = vunpack.c.l.b16 %v409
        %v1434 = vunpack.c.l.b16 %v410
        %v1435 = vunpack.c.l.b16 %v411
        %v1436 = vunpack.c.l.b16 %v412
        %v1437 = vunpack.c.l.b16 %v413
        %v1438 = vunpack.c.l.b16 %v414
        %v1439 = vunpack.c.l.b16 %v415
        %v1440 = vunpack.c.l.b16 %v416
        %v1441 = vunpack.c.l.b16 %v417
        %v1442 = vunpack.c.l.b16 %v418
        %v1443 = vunpack.c.l.b16 %v419
        %v1444 = vunpack.c.l.b16 %v420
        %v1445 = vunpack.c.l.b16 %v421
        %v1446 = vunpack.c.l.b16 %v422
        %v1447 = vunpack.c.l.b16 %v423
        %v1448 = vunpack.c.l.b16 %v424
        %v1449 = vunpack.c.l.b16 %v425
        %v1450 = vunpack.c.l.b16 %v426
        %v1451 = vunpack.c.l.b16 %v427
        %v1452 = vunpack.c.l.b16 %v428
        %v1453 = vunpack.c.l.b16 %v429
        %v1454 = vunpack.c.l.b16 %v430
        %v1455 = vunpack.c.l.b16 %v431
        %v1456 = vunpack.c.l.b16 %v432
        %v1457 = vunpack.c.l.b16 %v433
        %v1458 = vunpack.c.l.b16 %v434
        %v1459 = vunpack.c.l.b16 %v435
        %v1460 = vunpack.c.l.b16 %v436
        %v1461 = vunpack.c.l.b16 %v437
        %v1462 = vunpack.c.l.b16 %v438
        %v1463 = vunpack.c.l.b16 %v439
        %v1464 = vunpack.c.l.b16 %v440
        %v1465 = vunpack.c.l.b16 %v441
        %v1466 = vunpack.c.l.b16 %v442
        %v1467 = vunpack.c.l.b16 %v443
        %v1468 = vunpack.c.l.b16 %v444
        %v1469 = vunpack.c.l.b16 %v445
        %v1470 = vunpack.c.l.b16 %v446
        %v1471 = vunpack.c.l.b16 %v447
        %v1472 = vunpack.c.l.b16 %v448
        %v1473 = vunpack.c.l.b16 %v449
        %v1474 = vunpack.c.l.b16 %v450
        %v1475 = vunpack.c.l.b16 %v451
        %v1476 = vunpack.c.l.b16 %v452
        %v1477 = vunpack.c.l.b16 %v453
        %v1478 = vunpack.c.l.b16 %v454
        %v1479 = vunpack.c.l.b16 %v455
        %v1480 = vunpack.c.l.b16 %v456
        %v1481 = vunpack.c.l.b16 %v457
        %v1482 = vunpack.c.l.b16 %v458
        %v1483 = vunpack.c.l.b16 %v459
        %v1484 = vunpack.c.l.b16 %v460
        %v1485 = vunpack.c.l.b16 %v461
        %v1486 = vunpack.c.l.b16 %v462
        %v1487 = vunpack.c.l.b16 %v463
        %v1488 = vunpack.c.l.b16 %v464
        %v1489 = vunpack.c.l.b16 %v465
        %v1490 = vunpack.c.l.b16 %v466
        %v1491 = vunpack.c.l.b16 %v467
        %v1492 = vunpack.c.l.b16 %v468
        %v1493 = vunpack.c.l.b16 %v469
        %v1494 = vunpack.c.l.b16 %v470
        %v1495 = vunpack.c.l.b16 %v471
        %v1496 = vunpack.c.l.b16 %v472
        %v1497 = vunpack.c.l.b16 %v473
        %v1498 = vunpack.c.l.b16 %v474
        %v1499 = vunpack.c.l.b16 %v475
        %v1500 = vunpack.c.l.b16 %v476
        %v1501 = vunpack.c.l.b16 %v477
        %v1502 = vunpack.c.l.b16 %v478
        %v1503 = vunpack.c.l.b16 %v479
        %v1504 = vunpack.c.l.b16 %v480
        %v1505 = vunpack.c.l.b16 %v481
        %v1506 = vunpack.c.l.b16 %v482
        %v1507 = vunpack.c.l.b16 %v483
        %v1508 = vunpack.c.l.b16 %v484
        %v1509 = vunpack.c.l.b16 %v485
        %v1510 = vunpack.c.l.b16 %v486
        %v1511 = vunpack.c.l.b16 %v487
        %v1512 = vunpack.c.l.b16 %v488
        %v1513 = vunpack.c.l.b16 %v489
        %v1514 = vunpack.c.l.b16 %v490
        %v1515 = vunpack.c.l.b16 %v491
        %v1516 = vunpack.c.l.b16 %v492
        %v1517 = vunpack.c.l.b16 %v493
        %v1518 = vunpack.c.l.b16 %v494
        %v1519 = vunpack.c.l.b16 %v495
        %v1520 = vunpack.c.l.b16 %v496
        %v1521 = vunpack.c.l.b16 %v497
        %v1522 = vunpack.c.l.b16 %v498
        %v1523 = vunpack.c.l.b16 %v499
        %v1524 = vunpack.c.l.b16 %v500
        %v1525 = vunpack.c.l.b16 %v501
        %v1526 = vunpack.c.l.b16 %v502
        %v1527 = vunpack.c.l.b16 %v503
        %v1528 = vunpack.c.l.b16 %v504
        %v1529 = vunpack.c.l.b16 %v505
        %v1530 = vunpack.c.l.b16 %v506
        %v1531 = vunpack.c.l.b16 %v507
        %v1532 = vunpack.c.l.b16 %v508
        %v1533 = vunpack.c.l.b16 %v509
        %v1534 = vunpack.c.l.b16 %v510
        %v1535 = vunpack.c.l.b16 %v511
        %v1536 = vunpack.c.l.b16 %v512
        %v1537 = vunpack.c.l.b16 %v513
        %v1538 = vunpack.c.l.b16 %v514
        %v1539 = vunpack.c.l.b16 %v515
        %v1540 = vunpack.c.l.b16 %v516
        %v1541 = vunpack.c.l.b16 %v517
        %v1542 = vunpack.c.l.b16 %v518
        %v1543 = vunpack.c.l.b16 %v519
        %v1544 = vunpack.c.l.b16 %v520
        %v1545 = vunpack.c.l.b16 %v521
        %v1546 = vunpack.c.l.b16 %v522
        %v1547 = vunpack.c.l.b16 %v523
        %v1548 = vunpack.c.l.b16 %v524
        %v1549 = vunpack.c.l.b16 %v525
        %v1550 = vunpack.c.l.b16 %v526
        %v1551 = vunpack.c.l.b16 %v527
        %v1552 = vunpack.c.l.b16 %v528
        %v1553 = vunpack.c.l.b16 %v529
        %v1554 = vunpack.c.l.b16 %v530
        %v1555 = vunpack.c.l.b16 %v531
        %v1556 = vunpack.c.l.b16 %v532
        %v1557 = vunpack.c.l.b16 %v533
        %v1558 = vunpack.c.l.b16 %v534
        %v1559 = vunpack.c.l.b16 %v535
        %v1560 = vunpack.c.l.b16 %v536
        %v1561 = vunpack.c.l.b16 %v537
        %v1562 = vunpack.c.l.b16 %v538
        %v1563 = vunpack.c.l.b16 %v539
        %v1564 = vunpack.c.l.b16 %v540
        %v1565 = vunpack.c.l.b16 %v541
        %v1566 = vunpack.c.l.b16 %v542
        %v1567 = vunpack.c.l.b16 %v543
        %v1568 = vunpack.c.l.b16 %v544
        %v1569 = vunpack.c.l.b16 %v545
        %v1570 = vunpack.c.l.b16 %v546
        %v1571 = vunpack.c.l.b16 %v547
        %v1572 = vunpack.c.l.b16 %v548
        %v1573 = vunpack.c.l.b16 %v549
        %v1574 = vunpack.c.l.b16 %v550
        %v1575 = vunpack.c.l.b16 %v551
        %v1576 = vunpack.c.l.b16 %v552
        %v1577 = vunpack.c.l.b16 %v553
        %v1578 = vunpack.c.l.b16 %v554
        %v1579 = vunpack.c.l.b16 %v555
        %v1580 = vunpack.c.l.b16 %v556
        %v1581 = vunpack.c.l.b16 %v557
        %v1582 = vunpack.c.l.b16 %v558
        %v1583 = vunpack.c.l.b16 %v559
        %v1584 = vunpack.c.l.b16 %v560
        %v1585 = vunpack.c.l.b16 %v561
        %v1586 = vunpack.c.l.b16 %v562
        %v1587 = vunpack.c.l.b16 %v563
        %v1588 = vunpack.c.l.b16 %v564
        %v1589 = vunpack.c.l.b16 %v565
        %v1590 = vunpack.c.l.b16 %v566
        %v1591 = vunpack.c.l.b16 %v567
        %v1592 = vunpack.c.l.b16 %v568
        %v1593 = vunpack.c.l.b16 %v569
        %v1594 = vunpack.c.l.b16 %v570
        %v1595 = vunpack.c.l.b16 %v571
        %v1596 = vunpack.c.l.b16 %v572
        %v1597 = vunpack.c.l.b16 %v573
        %v1598 = vunpack.c.l.b16 %v574
        %v1599 = vunpack.c.l.b16 %v575
        %v1600 = vunpack.c.l.b16 %v576
        %v1601 = vunpack.c.l.b16 %v577
        %v1602 = vunpack.c.l.b16 %v578
        %v1603 = vunpack.c.l.b16 %v579
        %v1604 = vunpack.c.l.b16 %v580
        %v1605 = vunpack.c.l.b16 %v581
        %v1606 = vunpack.c.l.b16 %v582
        %v1607 = vunpack.c.l.b16 %v583
        %v1608 = vunpack.c.l.b16 %v584
        %v1609 = vunpack.c.l.b16 %v585
        %v1610 = vunpack.c.l.b16 %v586
        %v1611 = vunpack.c.l.b16 %v587
        %v1612 = vunpack.c.l.b16 %v588
        %v1613 = vunpack.c.l.b16 %v589
        %v1614 = vunpack.c.l.b16 %v590
        %v1615 = vunpack.c.l.b16 %v591
        %v1616 = vunpack.c.l.b16 %v592
        %v1617 = vunpack.c.l.b16 %v593
        %v1618 = vunpack.c.l.b16 %v594
        %v1619 = vunpack.c.l.b16 %v595
        %v1620 = vunpack.c.l.b16 %v596
        %v1621 = vunpack.c.l.b16 %v597
        %v1622 = vunpack.c.l.b16 %v598
        %v1623 = vunpack.c.l.b16 %v599
        %v1624 = vunpack.c.l.b16 %v600
        %v1625 = vunpack.c.l.b16 %v601
        %v1626 = vunpack.c.l.b16 %v602
        %v1627 = vunpack.c.l.b16 %v603
        %v1628 = vunpack.c.l.b16 %v604
        %v1629 = vunpack.c.l.b16 %v605
        %v1630 = vunpack.c.l.b16 %v606
        %v1631 = vunpack.c.l.b16 %v607
        %v1632 = vunpack.c.l.b16 %v608
        %v1633 = vunpack.c.l.b16 %v609
        %v1634 = vunpack.c.l.b16 %v610
        %v1635 = vunpack.c.l.b16 %v611
        %v1636 = vunpack.c.l.b16 %v612
        %v1637 = vunpack.c.l.b16 %v613
        %v1638 = vunpack.c.l.b16 %v614
        %v1639 = vunpack.c.l.b16 %v615
        %v1640 = vunpack.c.l.b16 %v616
        %v1641 = vunpack.c.l.b16 %v617
        %v1642 = vunpack.c.l.b16 %v618
        %v1643 = vunpack.c.l.b16 %v619
        %v1644 = vunpack.c.l.b16 %v620
        %v1645 = vunpack.c.l.b16 %v621
        %v1646 = vunpack.c.l.b16 %v622
        %v1647 = vunpack.c.l.b16 %v623
        %v1648 = vunpack.c.l.b16 %v624
        %v1649 = vunpack.c.l.b16 %v625
        %v1650 = vunpack.c.l.b16 %v626
        %v1651 = vunpack.c.l.b16 %v627
        %v1652 = vunpack.c.l.b16 %v628
        %v1653 = vunpack.c.l.b16 %v629
        %v1654 = vunpack.c.l.b16 %v630
        %v1655 = vunpack.c.l.b16 %v631
        %v1656 = vunpack.c.l.b16 %v632
        %v1657 = vunpack.c.l.b16 %v633
        %v1658 = vunpack.c.l.b16 %v634
        %v1659 = vunpack.c.l.b16 %v635
        %v1660 = vunpack.c.l.b16 %v636
        %v1661 = vunpack.c.l.b16 %v637
        %v1662 = vunpack.c.l.b16 %v638
        %v1663 = vunpack.c.l.b16 %v639
        %v1664 = vunpack.c.l.b16 %v640
        %v1665 = vunpack.c.l.b16 %v641
        %v1666 = vunpack.c.l.b16 %v642
        %v1667 = vunpack.c.l.b16 %v643
        %v1668 = vunpack.c.l.b16 %v644
        %v1669 = vunpack.c.l.b16 %v645
        %v1670 = vunpack.c.l.b16 %v646
        %v1671 = vunpack.c.l.b16 %v647
        %v1672 = vunpack.c.l.b16 %v648
        %v1673 = vunpack.c.l.b16 %v649
        %v1674 = vunpack.c.l.b16 %v650
        %v1675 = vunpack.c.l.b16 %v651
        %v1676 = vunpack.c.l.b16 %v652
        %v1677 = vunpack.c.l.b16 %v653
        %v1678 = vunpack.c.l.b16 %v654
        %v1679 = vunpack.c.l.b16 %v655
        %v1680 = vunpack.c.l.b16 %v656
        %v1681 = vunpack.c.l.b16 %v657
        %v1682 = vpack.c.b16 %v1171, %v1170
        %v1683 = vpack.c.b16 %v1173, %v1172
        %v1684 = vpack.c.b16 %v1175, %v1174
        %v1685 = vpack.c.b16 %v1177, %v1176
        %v1686 = vpack.c.b16 %v1179, %v1178
        %v1687 = vpack.c.b16 %v1181, %v1180
        %v1688 = vpack.c.b16 %v1183, %v1182
        %v1689 = vpack.c.b16 %v1185, %v1184
        %v1690 = vpack.c.b16 %v1187, %v1186
        %v1691 = vpack.c.b16 %v1189, %v1188
        %v1692 = vpack.c.b16 %v1191, %v1190
        %v1693 = vpack.c.b16 %v1193, %v1192
        %v1694 = vpack.c.b16 %v1195, %v1194
        %v1695 = vpack.c.b16 %v1197, %v1196
        %v1696 = vpack.c.b16 %v1199, %v1198
        %v1697 = vpack.c.b16 %v1201, %v1200
        %v1698 = vpack.c.b16 %v1203, %v1202
        %v1699 = vpack.c.b16 %v1205, %v1204
        %v1700 = vpack.c.b16 %v1207, %v1206
        %v1701 = vpack.c.b16 %v1209, %v1208
        %v1702 = vpack.c.b16 %v1211, %v1210
        %v1703 = vpack.c.b16 %v1213, %v1212
        %v1704 = vpack.c.b16 %v1215, %v1214
        %v1705 = vpack.c.b16 %v1217, %v1216
        %v1706 = vpack.c.b16 %v1219, %v1218
        %v1707 = vpack.c.b16 %v1221, %v1220
        %v1708 = vpack.c.b16 %v1223, %v1222
        %v1709 = vpack.c.b16 %v1225, %v1224
        %v1710 = vpack.c.b16 %v1227, %v1226
        %v1711 = vpack.c.b16 %v1229, %v1228
        %v1712 = vpack.c.b16 %v1231, %v1230
        %v1713 = vpack.c.b16 %v1233, %v1232
        %v1714 = vpack.c.b16 %v1235, %v1234
        %v1715 = vpack.c.b16 %v1237, %v1236
        %v1716 = vpack.c.b16 %v1239, %v1238
        %v1717 = vpack.c.b16 %v1241, %v1240
        %v1718 = vpack.c.b16 %v1243, %v1242
        %v1719 = vpack.c.b16 %v1245, %v1244
        %v1720 = vpack.c.b16 %v1247, %v1246
        %v1721 = vpack.c.b16 %v1249, %v1248
        %v1722 = vpack.c.b16 %v1251, %v1250
        %v1723 = vpack.c.b16 %v1253, %v1252
        %v1724 = vpack.c.b16 %v1255, %v1254
        %v1725 = vpack.c.b16 %v1257, %v1256
        %v1726 = vpack.c.b16 %v1259, %v1258
        %v1727 = vpack.c.b16 %v1261, %v1260
        %v1728 = vpack.c.b16 %v1263, %v1262
        %v1729 = vpack.c.b16 %v1265, %v1264
        %v1730 = vpack.c.b16 %v1267, %v1266
        %v1731 = vpack.c.b16 %v1269, %v1268
        %v1732 = vpack.c.b16 %v1271, %v1270
        %v1733 = vpack.c.b16 %v1273, %v1272
        %v1734 = vpack.c.b16 %v1275, %v1274
        %v1735 = vpack.c.b16 %v1277, %v1276
        %v1736 = vpack.c.b16 %v1279, %v1278
        %v1737 = vpack.c.b16 %v1281, %v1280
        %v1738 = vpack.c.b16 %v1283, %v1282
        %v1739 = vpack.c.b16 %v1285, %v1284
        %v1740 = vpack.c.b16 %v1287, %v1286
        %v1741 = vpack.c.b16 %v1289, %v1288
        %v1742 = vpack.c.b16 %v1291, %v1290
        %v1743 = vpack.c.b16 %v1293, %v1292
        %v1744 = vpack.c.b16 %v1295, %v1294
        %v1745 = vpack.c.b16 %v1297, %v1296
        %v1746 = vpack.c.b16 %v1299, %v1298
        %v1747 = vpack.c.b16 %v1301, %v1300
        %v1748 = vpack.c.b16 %v1303, %v1302
        %v1749 = vpack.c.b16 %v1305, %v1304
        %v1750 = vpack.c.b16 %v1307, %v1306
        %v1751 = vpack.c.b16 %v1309, %v1308
        %v1752 = vpack.c.b16 %v1311, %v1310
        %v1753 = vpack.c.b16 %v1313, %v1312
        %v1754 = vpack.c.b16 %v1315, %v1314
        %v1755 = vpack.c.b16 %v1317, %v1316
        %v1756 = vpack.c.b16 %v1319, %v1318
        %v1757 = vpack.c.b16 %v1321, %v1320
        %v1758 = vpack.c.b16 %v1323, %v1322
        %v1759 = vpack.c.b16 %v1325, %v1324
        %v1760 = vpack.c.b16 %v1327, %v1326
        %v1761 = vpack.c.b16 %v1329, %v1328
        %v1762 = vpack.c.b16 %v1331, %v1330
        %v1763 = vpack.c.b16 %v1333, %v1332
        %v1764 = vpack.c.b16 %v1335, %v1334
        %v1765 = vpack.c.b16 %v1337, %v1336
        %v1766 = vpack.c.b16 %v1339, %v1338
        %v1767 = vpack.c.b16 %v1341, %v1340
        %v1768 = vpack.c.b16 %v1343, %v1342
        %v1769 = vpack.c.b16 %v1345, %v1344
        %v1770 = vpack.c.b16 %v1347, %v1346
        %v1771 = vpack.c.b16 %v1349, %v1348
        %v1772 = vpack.c.b16 %v1351, %v1350
        %v1773 = vpack.c.b16 %v1353, %v1352
        %v1774 = vpack.c.b16 %v1355, %v1354
        %v1775 = vpack.c.b16 %v1357, %v1356
        %v1776 = vpack.c.b16 %v1359, %v1358
        %v1777 = vpack.c.b16 %v1361, %v1360
        %v1778 = vpack.c.b16 %v1363, %v1362
        %v1779 = vpack.c.b16 %v1365, %v1364
        %v1780 = vpack.c.b16 %v1367, %v1366
        %v1781 = vpack.c.b16 %v1369, %v1368
        %v1782 = vpack.c.b16 %v1371, %v1370
        %v1783 = vpack.c.b16 %v1373, %v1372
        %v1784 = vpack.c.b16 %v1375, %v1374
        %v1785 = vpack.c.b16 %v1377, %v1376
        %v1786 = vpack.c.b16 %v1379, %v1378
        %v1787 = vpack.c.b16 %v1381, %v1380
        %v1788 = vpack.c.b16 %v1383, %v1382
        %v1789 = vpack.c.b16 %v1385, %v1384
        %v1790 = vpack.c.b16 %v1387, %v1386
        %v1791 = vpack.c.b16 %v1389, %v1388
        %v1792 = vpack.c.b16 %v1391, %v1390
        %v1793 = vpack.c.b16 %v1393, %v1392
        %v1794 = vpack.c.b16 %v1395, %v1394
        %v1795 = vpack.c.b16 %v1397, %v1396
        %v1796 = vpack.c.b16 %v1399, %v1398
        %v1797 = vpack.c.b16 %v1401, %v1400
        %v1798 = vpack.c.b16 %v1403, %v1402
        %v1799 = vpack.c.b16 %v1405, %v1404
        %v1800 = vpack.c.b16 %v1407, %v1406
        %v1801 = vpack.c.b16 %v1409, %v1408
        %v1802 = vpack.c.b16 %v1411, %v1410
        %v1803 = vpack.c.b16 %v1413, %v1412
        %v1804 = vpack.c.b16 %v1415, %v1414
        %v1805 = vpack.c.b16 %v1417, %v1416
        %v1806 = vpack.c.b16 %v1419, %v1418
        %v1807 = vpack.c.b16 %v1421, %v1420
        %v1808 = vpack.c.b16 %v1423, %v1422
        %v1809 = vpack.c.b16 %v1425, %v1424
        %v1810 = vpack.c.b16 %v1427, %v1426
        %v1811 = vpack.c.b16 %v1429, %v1428
        %v1812 = vpack.c.b16 %v1431, %v1430
        %v1813 = vpack.c.b16 %v1433, %v1432
        %v1814 = vpack.c.b16 %v1435, %v1434
        %v1815 = vpack.c.b16 %v1437, %v1436
        %v1816 = vpack.c.b16 %v1439, %v1438
        %v1817 = vpack.c.b16 %v1441, %v1440
        %v1818 = vpack.c.b16 %v1443, %v1442
        %v1819 = vpack.c.b16 %v1445, %v1444
        %v1820 = vpack.c.b16 %v1447, %v1446
        %v1821 = vpack.c.b16 %v1449, %v1448
        %v1822 = vpack.c.b16 %v1451, %v1450
        %v1823 = vpack.c.b16 %v1453, %v1452
        %v1824 = vpack.c.b16 %v1455, %v1454
        %v1825 = vpack.c.b16 %v1457, %v1456
        %v1826 = vpack.c.b16 %v1459, %v1458
        %v1827 = vpack.c.b16 %v1461, %v1460
        %v1828 = vpack.c.b16 %v1463, %v1462
        %v1829 = vpack.c.b16 %v1465, %v1464
        %v1830 = vpack.c.b16 %v1467, %v1466
        %v1831 = vpack.c.b16 %v1469, %v1468
        %v1832 = vpack.c.b16 %v1471, %v1470
        %v1833 = vpack.c.b16 %v1473, %v1472
        %v1834 = vpack.c.b16 %v1475, %v1474
        %v1835 = vpack.c.b16 %v1477, %v1476
        %v1836 = vpack.c.b16 %v1479, %v1478
        %v1837 = vpack.c.b16 %v1481, %v1480
        %v1838 = vpack.c.b16 %v1483, %v1482
        %v1839 = vpack.c.b16 %v1485, %v1484
        %v1840 = vpack.c.b16 %v1487, %v1486
        %v1841 = vpack.c.b16 %v1489, %v1488
        %v1842 = vpack.c.b16 %v1491, %v1490
        %v1843 = vpack.c.b16 %v1493, %v1492
        %v1844 = vpack.c.b16 %v1495, %v1494
        %v1845 = vpack.c.b16 %v1497, %v1496
        %v1846 = vpack.c.b16 %v1499, %v1498
        %v1847 = vpack.c.b16 %v1501, %v1500
        %v1848 = vpack.c.b16 %v1503, %v1502
        %v1849 = vpack.c.b16 %v1505, %v1504
        %v1850 = vpack.c.b16 %v1507, %v1506
        %v1851 = vpack.c.b16 %v1509, %v1508
        %v1852 = vpack.c.b16 %v1511, %v1510
        %v1853 = vpack.c.b16 %v1513, %v1512
        %v1854 = vpack.c.b16 %v1515, %v1514
        %v1855 = vpack.c.b16 %v1517, %v1516
        %v1856 = vpack.c.b16 %v1519, %v1518
        %v1857 = vpack.c.b16 %v1521, %v1520
        %v1858 = vpack.c.b16 %v1523, %v1522
        %v1859 = vpack.c.b16 %v1525, %v1524
        %v1860 = vpack.c.b16 %v1527, %v1526
        %v1861 = vpack.c.b16 %v1529, %v1528
        %v1862 = vpack.c.b16 %v1531, %v1530
        %v1863 = vpack.c.b16 %v1533, %v1532
        %v1864 = vpack.c.b16 %v1535, %v1534
        %v1865 = vpack.c.b16 %v1537, %v1536
        %v1866 = vpack.c.b16 %v1539, %v1538
        %v1867 = vpack.c.b16 %v1541, %v1540
        %v1868 = vpack.c.b16 %v1543, %v1542
        %v1869 = vpack.c.b16 %v1545, %v1544
        %v1870 = vpack.c.b16 %v1547, %v1546
        %v1871 = vpack.c.b16 %v1549, %v1548
        %v1872 = vpack.c.b16 %v1551, %v1550
        %v1873 = vpack.c.b16 %v1553, %v1552
        %v1874 = vpack.c.b16 %v1555, %v1554
        %v1875 = vpack.c.b16 %v1557, %v1556
        %v1876 = vpack.c.b16 %v1559, %v1558
        %v1877 = vpack.c.b16 %v1561, %v1560
        %v1878 = vpack.c.b16 %v1563, %v1562
        %v1879 = vpack.c.b16 %v1565, %v1564
        %v1880 = vpack.c.b16 %v1567, %v1566
        %v1881 = vpack.c.b16 %v1569, %v1568
        %v1882 = vpack.c.b16 %v1571, %v1570
        %v1883 = vpack.c.b16 %v1573, %v1572
        %v1884 = vpack.c.b16 %v1575, %v1574
        %v1885 = vpack.c.b16 %v1577, %v1576
        %v1886 = vpack.c.b16 %v1579, %v1578
        %v1887 = vpack.c.b16 %v1581, %v1580
        %v1888 = vpack.c.b16 %v1583, %v1582
        %v1889 = vpack.c.b16 %v1585, %v1584
        %v1890 = vpack.c.b16 %v1587, %v1586
        %v1891 = vpack.c.b16 %v1589, %v1588
        %v1892 = vpack.c.b16 %v1591, %v1590
        %v1893 = vpack.c.b16 %v1593, %v1592
        %v1894 = vpack.c.b16 %v1595, %v1594
        %v1895 = vpack.c.b16 %v1597, %v1596
        %v1896 = vpack.c.b16 %v1599, %v1598
        %v1897 = vpack.c.b16 %v1601, %v1600
        %v1898 = vpack.c.b16 %v1603, %v1602
        %v1899 = vpack.c.b16 %v1605, %v1604
        %v1900 = vpack.c.b16 %v1607, %v1606
        %v1901 = vpack.c.b16 %v1609, %v1608
        %v1902 = vpack.c.b16 %v1611, %v1610
        %v1903 = vpack.c.b16 %v1613, %v1612
        %v1904 = vpack.c.b16 %v1615, %v1614
        %v1905 = vpack.c.b16 %v1617, %v1616
        %v1906 = vpack.c.b16 %v1619, %v1618
        %v1907 = vpack.c.b16 %v1621, %v1620
        %v1908 = vpack.c.b16 %v1623, %v1622
        %v1909 = vpack.c.b16 %v1625, %v1624
        %v1910 = vpack.c.b16 %v1627, %v1626
        %v1911 = vpack.c.b16 %v1629, %v1628
        %v1912 = vpack.c.b16 %v1631, %v1630
        %v1913 = vpack.c.b16 %v1633, %v1632
        %v1914 = vpack.c.b16 %v1635, %v1634
        %v1915 = vpack.c.b16 %v1637, %v1636
        %v1916 = vpack.c.b16 %v1639, %v1638
        %v1917 = vpack.c.b16 %v1641, %v1640
        %v1918 = vpack.c.b16 %v1643, %v1642
        %v1919 = vpack.c.b16 %v1645, %v1644
        %v1920 = vpack.c.b16 %v1647, %v1646
        %v1921 = vpack.c.b16 %v1649, %v1648
        %v1922 = vpack.c.b16 %v1651, %v1650
        %v1923 = vpack.c.b16 %v1653, %v1652
        %v1924 = vpack.c.b16 %v1655, %v1654
        %v1925 = vpack.c.b16 %v1657, %v1656
        %v1926 = vpack.c.b16 %v1659, %v1658
        %v1927 = vpack.c.b16 %v1661, %v1660
        %v1928 = vpack.c.b16 %v1663, %v1662
        %v1929 = vpack.c.b16 %v1665, %v1664
        %v1930 = vpack.c.b16 %v1667, %v1666
        %v1931 = vpack.c.b16 %v1669, %v1668
        %v1932 = vpack.c.b16 %v1671, %v1670
        %v1933 = vpack.c.b16 %v1673, %v1672
        %v1934 = vpack.c.b16 %v1675, %v1674
        %v1935 = vpack.c.b16 %v1677, %v1676
        %v1936 = vpack.c.b16 %v1679, %v1678
        %v1937 = vpack.c.b16 %v1681, %v1680
        %2194 = vmatpush.bf16.xpose.msra.mxu0 %v1689
        %2195 = vmatpush.bf16.xpose.msra.mxu0 %v1688
        %2196 = vmatpush.bf16.xpose.msra.mxu0 %v1687
        %2197 = vmatpush.bf16.xpose.msra.mxu0 %v1686
        %2198 = vmatpush.bf16.xpose.msra.mxu0 %v1685
        %2199 = vmatpush.bf16.xpose.msra.mxu0 %v1684
        %2200 = vmatpush.bf16.xpose.msra.mxu0 %v1683
        %2201 = vmatpush.bf16.xpose.msra.mxu0 %v1682
        %2202 = vmatmul.bf16.gmra.mxu0 %v145
        %v2203 = vpop.f32.mrf.mxu0
        %v2204 = vadd.f32 0.0, %v2203
        %v2205 = vpop.f32.mrf.mxu0
        %2206 = vdwg.mxu0
        %2207 = vmatpush.bf16.xpose.msra.mxu0 %v1697
        %2208 = vmatpush.bf16.xpose.msra.mxu0 %v1696
        %2209 = vmatpush.bf16.xpose.msra.mxu0 %v1695
        %2210 = vmatpush.bf16.xpose.msra.mxu0 %v1694
        %2211 = vmatpush.bf16.xpose.msra.mxu0 %v1693
        %2212 = vmatpush.bf16.xpose.msra.mxu0 %v1692
        %2213 = vmatpush.bf16.xpose.msra.mxu0 %v1691
        %2214 = vmatpush.bf16.xpose.msra.mxu0 %v1690
        %2215 = vmatmul.bf16.gmra.mxu0 %v145
        %v2216 = vpop.f32.mrf.mxu0
        %v2217 = vadd.f32 0.0, %v2216
        %v2218 = vpop.f32.mrf.mxu0
        %2219 = vdwg.mxu0
        %2220 = vmatpush.bf16.xpose.msra.mxu0 %v1705
        %2221 = vmatpush.bf16.xpose.msra.mxu0 %v1704
        %2222 = vmatpush.bf16.xpose.msra.mxu0 %v1703
        %2223 = vmatpush.bf16.xpose.msra.mxu0 %v1702
        %2224 = vmatpush.bf16.xpose.msra.mxu0 %v1701
        %2225 = vmatpush.bf16.xpose.msra.mxu0 %v1700
        %2226 = vmatpush.bf16.xpose.msra.mxu0 %v1699
        %2227 = vmatpush.bf16.xpose.msra.mxu0 %v1698
        %2228 = vmatmul.bf16.gmra.mxu0 %v145
        %v2229 = vpop.f32.mrf.mxu0
        %v2230 = vadd.f32 0.0, %v2229
        %v2231 = vpop.f32.mrf.mxu0
        %2232 = vdwg.mxu0
        %2233 = vmatpush.bf16.xpose.msra.mxu0 %v1713
        %2234 = vmatpush.bf16.xpose.msra.mxu0 %v1712
        %2235 = vmatpush.bf16.xpose.msra.mxu0 %v1711
        %2236 = vmatpush.bf16.xpose.msra.mxu0 %v1710
        %2237 = vmatpush.bf16.xpose.msra.mxu0 %v1709
        %2238 = vmatpush.bf16.xpose.msra.mxu0 %v1708
        %2239 = vmatpush.bf16.xpose.msra.mxu0 %v1707
        %2240 = vmatpush.bf16.xpose.msra.mxu0 %v1706
        %2241 = vmatmul.bf16.gmra.mxu0 %v145
        %v2242 = vpop.f32.mrf.mxu0
        %v2243 = vadd.f32 0.0, %v2242
        %v2244 = vpop.f32.mrf.mxu0
        %2245 = vdwg.mxu0
        %2246 = vmatpush.bf16.xpose.msra.mxu0 %v1721
        %2247 = vmatpush.bf16.xpose.msra.mxu0 %v1720
        %2248 = vmatpush.bf16.xpose.msra.mxu0 %v1719
        %2249 = vmatpush.bf16.xpose.msra.mxu0 %v1718
        %2250 = vmatpush.bf16.xpose.msra.mxu0 %v1717
        %2251 = vmatpush.bf16.xpose.msra.mxu0 %v1716
        %2252 = vmatpush.bf16.xpose.msra.mxu0 %v1715
        %2253 = vmatpush.bf16.xpose.msra.mxu0 %v1714
        %2254 = vmatmul.bf16.gmra.mxu0 %v145
        %v2255 = vpop.f32.mrf.mxu0
        %v2256 = vadd.f32 0.0, %v2255
        %v2257 = vpop.f32.mrf.mxu0
        %2258 = vdwg.mxu0
        %2259 = vmatpush.bf16.xpose.msra.mxu0 %v1729
        %2260 = vmatpush.bf16.xpose.msra.mxu0 %v1728
        %2261 = vmatpush.bf16.xpose.msra.mxu0 %v1727
        %2262 = vmatpush.bf16.xpose.msra.mxu0 %v1726
        %2263 = vmatpush.bf16.xpose.msra.mxu0 %v1725
        %2264 = vmatpush.bf16.xpose.msra.mxu0 %v1724
        %2265 = vmatpush.bf16.xpose.msra.mxu0 %v1723
        %2266 = vmatpush.bf16.xpose.msra.mxu0 %v1722
        %2267 = vmatmul.bf16.gmra.mxu0 %v145
        %v2268 = vpop.f32.mrf.mxu0
        %v2269 = vadd.f32 0.0, %v2268
        %v2270 = vpop.f32.mrf.mxu0
        %2271 = vdwg.mxu0
        %2272 = vmatpush.bf16.xpose.msra.mxu0 %v1737
        %2273 = vmatpush.bf16.xpose.msra.mxu0 %v1736
        %2274 = vmatpush.bf16.xpose.msra.mxu0 %v1735
        %2275 = vmatpush.bf16.xpose.msra.mxu0 %v1734
        %2276 = vmatpush.bf16.xpose.msra.mxu0 %v1733
        %2277 = vmatpush.bf16.xpose.msra.mxu0 %v1732
        %2278 = vmatpush.bf16.xpose.msra.mxu0 %v1731
        %2279 = vmatpush.bf16.xpose.msra.mxu0 %v1730
        %2280 = vmatmul.bf16.gmra.mxu0 %v145
        %v2281 = vpop.f32.mrf.mxu0
        %v2282 = vadd.f32 0.0, %v2281
        %v2283 = vpop.f32.mrf.mxu0
        %2284 = vdwg.mxu0
        %2285 = vmatpush.bf16.xpose.msra.mxu0 %v1745
        %2286 = vmatpush.bf16.xpose.msra.mxu0 %v1744
        %2287 = vmatpush.bf16.xpose.msra.mxu0 %v1743
        %2288 = vmatpush.bf16.xpose.msra.mxu0 %v1742
        %2289 = vmatpush.bf16.xpose.msra.mxu0 %v1741
        %2290 = vmatpush.bf16.xpose.msra.mxu0 %v1740
        %2291 = vmatpush.bf16.xpose.msra.mxu0 %v1739
        %2292 = vmatpush.bf16.xpose.msra.mxu0 %v1738
        %2293 = vmatmul.bf16.gmra.mxu0 %v145
        %v2294 = vpop.f32.mrf.mxu0
        %v2295 = vadd.f32 0.0, %v2294
        %v2296 = vpop.f32.mrf.mxu0
        %2297 = vdwg.mxu0
        %2298 = vmatpush.bf16.xpose.msra.mxu0 %v1753
        %2299 = vmatpush.bf16.xpose.msra.mxu0 %v1752
        %2300 = vmatpush.bf16.xpose.msra.mxu0 %v1751
        %2301 = vmatpush.bf16.xpose.msra.mxu0 %v1750
        %2302 = vmatpush.bf16.xpose.msra.mxu0 %v1749
        %2303 = vmatpush.bf16.xpose.msra.mxu0 %v1748
        %2304 = vmatpush.bf16.xpose.msra.mxu0 %v1747
        %2305 = vmatpush.bf16.xpose.msra.mxu0 %v1746
        %2306 = vmatmul.bf16.gmra.mxu0 %v145
        %v2307 = vpop.f32.mrf.mxu0
        %v2308 = vadd.f32 0.0, %v2307
        %v2309 = vpop.f32.mrf.mxu0
        %2310 = vdwg.mxu0
        %2311 = vmatpush.bf16.xpose.msra.mxu0 %v1761
        %2312 = vmatpush.bf16.xpose.msra.mxu0 %v1760
        %2313 = vmatpush.bf16.xpose.msra.mxu0 %v1759
        %2314 = vmatpush.bf16.xpose.msra.mxu0 %v1758
        %2315 = vmatpush.bf16.xpose.msra.mxu0 %v1757
        %2316 = vmatpush.bf16.xpose.msra.mxu0 %v1756
        %2317 = vmatpush.bf16.xpose.msra.mxu0 %v1755
        %2318 = vmatpush.bf16.xpose.msra.mxu0 %v1754
        %2319 = vmatmul.bf16.gmra.mxu0 %v145
        %v2320 = vpop.f32.mrf.mxu0
        %v2321 = vadd.f32 0.0, %v2320
        %v2322 = vpop.f32.mrf.mxu0
        %2323 = vdwg.mxu0
        %2324 = vmatpush.bf16.xpose.msra.mxu0 %v1769
        %2325 = vmatpush.bf16.xpose.msra.mxu0 %v1768
        %2326 = vmatpush.bf16.xpose.msra.mxu0 %v1767
        %2327 = vmatpush.bf16.xpose.msra.mxu0 %v1766
        %2328 = vmatpush.bf16.xpose.msra.mxu0 %v1765
        %2329 = vmatpush.bf16.xpose.msra.mxu0 %v1764
        %2330 = vmatpush.bf16.xpose.msra.mxu0 %v1763
        %2331 = vmatpush.bf16.xpose.msra.mxu0 %v1762
        %2332 = vmatmul.bf16.gmra.mxu0 %v145
        %v2333 = vpop.f32.mrf.mxu0
        %v2334 = vadd.f32 0.0, %v2333
        %v2335 = vpop.f32.mrf.mxu0
        %2336 = vdwg.mxu0
        %2337 = vmatpush.bf16.xpose.msra.mxu0 %v1777
        %2338 = vmatpush.bf16.xpose.msra.mxu0 %v1776
        %2339 = vmatpush.bf16.xpose.msra.mxu0 %v1775
        %2340 = vmatpush.bf16.xpose.msra.mxu0 %v1774
        %2341 = vmatpush.bf16.xpose.msra.mxu0 %v1773
        %2342 = vmatpush.bf16.xpose.msra.mxu0 %v1772
        %2343 = vmatpush.bf16.xpose.msra.mxu0 %v1771
        %2344 = vmatpush.bf16.xpose.msra.mxu0 %v1770
        %2345 = vmatmul.bf16.gmra.mxu0 %v145
        %v2346 = vpop.f32.mrf.mxu0
        %v2347 = vadd.f32 0.0, %v2346
        %v2348 = vpop.f32.mrf.mxu0
        %2349 = vdwg.mxu0
        %2350 = vmatpush.bf16.xpose.msra.mxu0 %v1785
        %2351 = vmatpush.bf16.xpose.msra.mxu0 %v1784
        %2352 = vmatpush.bf16.xpose.msra.mxu0 %v1783
        %2353 = vmatpush.bf16.xpose.msra.mxu0 %v1782
        %2354 = vmatpush.bf16.xpose.msra.mxu0 %v1781
        %2355 = vmatpush.bf16.xpose.msra.mxu0 %v1780
        %2356 = vmatpush.bf16.xpose.msra.mxu0 %v1779
        %2357 = vmatpush.bf16.xpose.msra.mxu0 %v1778
        %2358 = vmatmul.bf16.gmra.mxu0 %v145
        %v2359 = vpop.f32.mrf.mxu0
        %v2360 = vadd.f32 0.0, %v2359
        %v2361 = vpop.f32.mrf.mxu0
        %2362 = vdwg.mxu0
        %2363 = vmatpush.bf16.xpose.msra.mxu0 %v1793
        %2364 = vmatpush.bf16.xpose.msra.mxu0 %v1792
        %2365 = vmatpush.bf16.xpose.msra.mxu0 %v1791
        %2366 = vmatpush.bf16.xpose.msra.mxu0 %v1790
        %2367 = vmatpush.bf16.xpose.msra.mxu0 %v1789
        %2368 = vmatpush.bf16.xpose.msra.mxu0 %v1788
        %2369 = vmatpush.bf16.xpose.msra.mxu0 %v1787
        %2370 = vmatpush.bf16.xpose.msra.mxu0 %v1786
        %2371 = vmatmul.bf16.gmra.mxu0 %v145
        %v2372 = vpop.f32.mrf.mxu0
        %v2373 = vadd.f32 0.0, %v2372
        %v2374 = vpop.f32.mrf.mxu0
        %2375 = vdwg.mxu0
        %2376 = vmatpush.bf16.xpose.msra.mxu0 %v1801
        %2377 = vmatpush.bf16.xpose.msra.mxu0 %v1800
        %2378 = vmatpush.bf16.xpose.msra.mxu0 %v1799
        %2379 = vmatpush.bf16.xpose.msra.mxu0 %v1798
        %2380 = vmatpush.bf16.xpose.msra.mxu0 %v1797
        %2381 = vmatpush.bf16.xpose.msra.mxu0 %v1796
        %2382 = vmatpush.bf16.xpose.msra.mxu0 %v1795
        %2383 = vmatpush.bf16.xpose.msra.mxu0 %v1794
        %2384 = vmatmul.bf16.gmra.mxu0 %v145
        %v2385 = vpop.f32.mrf.mxu0
        %v2386 = vadd.f32 0.0, %v2385
        %v2387 = vpop.f32.mrf.mxu0
        %2388 = vdwg.mxu0
        %2389 = vmatpush.bf16.xpose.msra.mxu0 %v1809
        %2390 = vmatpush.bf16.xpose.msra.mxu0 %v1808
        %2391 = vmatpush.bf16.xpose.msra.mxu0 %v1807
        %2392 = vmatpush.bf16.xpose.msra.mxu0 %v1806
        %2393 = vmatpush.bf16.xpose.msra.mxu0 %v1805
        %2394 = vmatpush.bf16.xpose.msra.mxu0 %v1804
        %2395 = vmatpush.bf16.xpose.msra.mxu0 %v1803
        %2396 = vmatpush.bf16.xpose.msra.mxu0 %v1802
        %2397 = vmatmul.bf16.gmra.mxu0 %v145
        %v2398 = vpop.f32.mrf.mxu0
        %v2399 = vadd.f32 0.0, %v2398
        %v2400 = vpop.f32.mrf.mxu0
        %2401 = vdwg.mxu0
        %2402 = vmatpush.bf16.xpose.msra.mxu0 %v1817
        %2403 = vmatpush.bf16.xpose.msra.mxu0 %v1816
        %2404 = vmatpush.bf16.xpose.msra.mxu0 %v1815
        %2405 = vmatpush.bf16.xpose.msra.mxu0 %v1814
        %2406 = vmatpush.bf16.xpose.msra.mxu0 %v1813
        %2407 = vmatpush.bf16.xpose.msra.mxu0 %v1812
        %2408 = vmatpush.bf16.xpose.msra.mxu0 %v1811
        %2409 = vmatpush.bf16.xpose.msra.mxu0 %v1810
        %2410 = vmatmul.bf16.gmra.mxu0 %v145
        %v2411 = vpop.f32.mrf.mxu0
        %v2412 = vadd.f32 0.0, %v2411
        %v2413 = vpop.f32.mrf.mxu0
        %2414 = vdwg.mxu0
        %2415 = vmatpush.bf16.xpose.msra.mxu0 %v1825
        %2416 = vmatpush.bf16.xpose.msra.mxu0 %v1824
        %2417 = vmatpush.bf16.xpose.msra.mxu0 %v1823
        %2418 = vmatpush.bf16.xpose.msra.mxu0 %v1822
        %2419 = vmatpush.bf16.xpose.msra.mxu0 %v1821
        %2420 = vmatpush.bf16.xpose.msra.mxu0 %v1820
        %2421 = vmatpush.bf16.xpose.msra.mxu0 %v1819
        %2422 = vmatpush.bf16.xpose.msra.mxu0 %v1818
        %2423 = vmatmul.bf16.gmra.mxu0 %v145
        %v2424 = vpop.f32.mrf.mxu0
        %v2425 = vadd.f32 0.0, %v2424
        %v2426 = vpop.f32.mrf.mxu0
        %2427 = vdwg.mxu0
        %2428 = vmatpush.bf16.xpose.msra.mxu0 %v1833
        %2429 = vmatpush.bf16.xpose.msra.mxu0 %v1832
        %2430 = vmatpush.bf16.xpose.msra.mxu0 %v1831
        %2431 = vmatpush.bf16.xpose.msra.mxu0 %v1830
        %2432 = vmatpush.bf16.xpose.msra.mxu0 %v1829
        %2433 = vmatpush.bf16.xpose.msra.mxu0 %v1828
        %2434 = vmatpush.bf16.xpose.msra.mxu0 %v1827
        %2435 = vmatpush.bf16.xpose.msra.mxu0 %v1826
        %2436 = vmatmul.bf16.gmra.mxu0 %v145
        %v2437 = vpop.f32.mrf.mxu0
        %v2438 = vadd.f32 0.0, %v2437
        %v2439 = vpop.f32.mrf.mxu0
        %2440 = vdwg.mxu0
        %2441 = vmatpush.bf16.xpose.msra.mxu0 %v1841
        %2442 = vmatpush.bf16.xpose.msra.mxu0 %v1840
        %2443 = vmatpush.bf16.xpose.msra.mxu0 %v1839
        %2444 = vmatpush.bf16.xpose.msra.mxu0 %v1838
        %2445 = vmatpush.bf16.xpose.msra.mxu0 %v1837
        %2446 = vmatpush.bf16.xpose.msra.mxu0 %v1836
        %2447 = vmatpush.bf16.xpose.msra.mxu0 %v1835
        %2448 = vmatpush.bf16.xpose.msra.mxu0 %v1834
        %2449 = vmatmul.bf16.gmra.mxu0 %v145
        %v2450 = vpop.f32.mrf.mxu0
        %v2451 = vadd.f32 0.0, %v2450
        %v2452 = vpop.f32.mrf.mxu0
        %2453 = vdwg.mxu0
        %2454 = vmatpush.bf16.xpose.msra.mxu0 %v1849
        %2455 = vmatpush.bf16.xpose.msra.mxu0 %v1848
        %2456 = vmatpush.bf16.xpose.msra.mxu0 %v1847
        %2457 = vmatpush.bf16.xpose.msra.mxu0 %v1846
        %2458 = vmatpush.bf16.xpose.msra.mxu0 %v1845
        %2459 = vmatpush.bf16.xpose.msra.mxu0 %v1844
        %2460 = vmatpush.bf16.xpose.msra.mxu0 %v1843
        %2461 = vmatpush.bf16.xpose.msra.mxu0 %v1842
        %2462 = vmatmul.bf16.gmra.mxu0 %v145
        %v2463 = vpop.f32.mrf.mxu0
        %v2464 = vadd.f32 0.0, %v2463
        %v2465 = vpop.f32.mrf.mxu0
        %2466 = vdwg.mxu0
        %2467 = vmatpush.bf16.xpose.msra.mxu0 %v1857
        %2468 = vmatpush.bf16.xpose.msra.mxu0 %v1856
        %2469 = vmatpush.bf16.xpose.msra.mxu0 %v1855
        %2470 = vmatpush.bf16.xpose.msra.mxu0 %v1854
        %2471 = vmatpush.bf16.xpose.msra.mxu0 %v1853
        %2472 = vmatpush.bf16.xpose.msra.mxu0 %v1852
        %2473 = vmatpush.bf16.xpose.msra.mxu0 %v1851
        %2474 = vmatpush.bf16.xpose.msra.mxu0 %v1850
        %2475 = vmatmul.bf16.gmra.mxu0 %v145
        %v2476 = vpop.f32.mrf.mxu0
        %v2477 = vadd.f32 0.0, %v2476
        %v2478 = vpop.f32.mrf.mxu0
        %2479 = vdwg.mxu0
        %2480 = vmatpush.bf16.xpose.msra.mxu0 %v1865
        %2481 = vmatpush.bf16.xpose.msra.mxu0 %v1864
        %2482 = vmatpush.bf16.xpose.msra.mxu0 %v1863
        %2483 = vmatpush.bf16.xpose.msra.mxu0 %v1862
        %2484 = vmatpush.bf16.xpose.msra.mxu0 %v1861
        %2485 = vmatpush.bf16.xpose.msra.mxu0 %v1860
        %2486 = vmatpush.bf16.xpose.msra.mxu0 %v1859
        %2487 = vmatpush.bf16.xpose.msra.mxu0 %v1858
        %2488 = vmatmul.bf16.gmra.mxu0 %v145
        %v2489 = vpop.f32.mrf.mxu0
        %v2490 = vadd.f32 0.0, %v2489
        %v2491 = vpop.f32.mrf.mxu0
        %2492 = vdwg.mxu0
        %2493 = vmatpush.bf16.xpose.msra.mxu0 %v1873
        %2494 = vmatpush.bf16.xpose.msra.mxu0 %v1872
        %2495 = vmatpush.bf16.xpose.msra.mxu0 %v1871
        %2496 = vmatpush.bf16.xpose.msra.mxu0 %v1870
        %2497 = vmatpush.bf16.xpose.msra.mxu0 %v1869
        %2498 = vmatpush.bf16.xpose.msra.mxu0 %v1868
        %2499 = vmatpush.bf16.xpose.msra.mxu0 %v1867
        %2500 = vmatpush.bf16.xpose.msra.mxu0 %v1866
        %2501 = vmatmul.bf16.gmra.mxu0 %v145
        %v2502 = vpop.f32.mrf.mxu0
        %v2503 = vadd.f32 0.0, %v2502
        %v2504 = vpop.f32.mrf.mxu0
        %2505 = vdwg.mxu0
        %2506 = vmatpush.bf16.xpose.msra.mxu0 %v1881
        %2507 = vmatpush.bf16.xpose.msra.mxu0 %v1880
        %2508 = vmatpush.bf16.xpose.msra.mxu0 %v1879
        %2509 = vmatpush.bf16.xpose.msra.mxu0 %v1878
        %2510 = vmatpush.bf16.xpose.msra.mxu0 %v1877
        %2511 = vmatpush.bf16.xpose.msra.mxu0 %v1876
        %2512 = vmatpush.bf16.xpose.msra.mxu0 %v1875
        %2513 = vmatpush.bf16.xpose.msra.mxu0 %v1874
        %2514 = vmatmul.bf16.gmra.mxu0 %v145
        %v2515 = vpop.f32.mrf.mxu0
        %v2516 = vadd.f32 0.0, %v2515
        %v2517 = vpop.f32.mrf.mxu0
        %2518 = vdwg.mxu0
        %2519 = vmatpush.bf16.xpose.msra.mxu0 %v1889
        %2520 = vmatpush.bf16.xpose.msra.mxu0 %v1888
        %2521 = vmatpush.bf16.xpose.msra.mxu0 %v1887
        %2522 = vmatpush.bf16.xpose.msra.mxu0 %v1886
        %2523 = vmatpush.bf16.xpose.msra.mxu0 %v1885
        %2524 = vmatpush.bf16.xpose.msra.mxu0 %v1884
        %2525 = vmatpush.bf16.xpose.msra.mxu0 %v1883
        %2526 = vmatpush.bf16.xpose.msra.mxu0 %v1882
        %2527 = vmatmul.bf16.gmra.mxu0 %v145
        %v2528 = vpop.f32.mrf.mxu0
        %v2529 = vadd.f32 0.0, %v2528
        %v2530 = vpop.f32.mrf.mxu0
        %2531 = vdwg.mxu0
        %2532 = vmatpush.bf16.xpose.msra.mxu0 %v1897
        %2533 = vmatpush.bf16.xpose.msra.mxu0 %v1896
        %2534 = vmatpush.bf16.xpose.msra.mxu0 %v1895
        %2535 = vmatpush.bf16.xpose.msra.mxu0 %v1894
        %2536 = vmatpush.bf16.xpose.msra.mxu0 %v1893
        %2537 = vmatpush.bf16.xpose.msra.mxu0 %v1892
        %2538 = vmatpush.bf16.xpose.msra.mxu0 %v1891
        %2539 = vmatpush.bf16.xpose.msra.mxu0 %v1890
        %2540 = vmatmul.bf16.gmra.mxu0 %v145
        %v2541 = vpop.f32.mrf.mxu0
        %v2542 = vadd.f32 0.0, %v2541
        %v2543 = vpop.f32.mrf.mxu0
        %2544 = vdwg.mxu0
        %2545 = vmatpush.bf16.xpose.msra.mxu0 %v1905
        %2546 = vmatpush.bf16.xpose.msra.mxu0 %v1904
        %2547 = vmatpush.bf16.xpose.msra.mxu0 %v1903
        %2548 = vmatpush.bf16.xpose.msra.mxu0 %v1902
        %2549 = vmatpush.bf16.xpose.msra.mxu0 %v1901
        %2550 = vmatpush.bf16.xpose.msra.mxu0 %v1900
        %2551 = vmatpush.bf16.xpose.msra.mxu0 %v1899
        %2552 = vmatpush.bf16.xpose.msra.mxu0 %v1898
        %2553 = vmatmul.bf16.gmra.mxu0 %v145
        %v2554 = vpop.f32.mrf.mxu0
        %v2555 = vadd.f32 0.0, %v2554
        %v2556 = vpop.f32.mrf.mxu0
        %2557 = vdwg.mxu0
        %2558 = vmatpush.bf16.xpose.msra.mxu0 %v1913
        %2559 = vmatpush.bf16.xpose.msra.mxu0 %v1912
        %2560 = vmatpush.bf16.xpose.msra.mxu0 %v1911
        %2561 = vmatpush.bf16.xpose.msra.mxu0 %v1910
        %2562 = vmatpush.bf16.xpose.msra.mxu0 %v1909
        %2563 = vmatpush.bf16.xpose.msra.mxu0 %v1908
        %2564 = vmatpush.bf16.xpose.msra.mxu0 %v1907
        %2565 = vmatpush.bf16.xpose.msra.mxu0 %v1906
        %2566 = vmatmul.bf16.gmra.mxu0 %v145
        %v2567 = vpop.f32.mrf.mxu0
        %v2568 = vadd.f32 0.0, %v2567
        %v2569 = vpop.f32.mrf.mxu0
        %2570 = vdwg.mxu0
        %2571 = vmatpush.bf16.xpose.msra.mxu0 %v1921
        %2572 = vmatpush.bf16.xpose.msra.mxu0 %v1920
        %2573 = vmatpush.bf16.xpose.msra.mxu0 %v1919
        %2574 = vmatpush.bf16.xpose.msra.mxu0 %v1918
        %2575 = vmatpush.bf16.xpose.msra.mxu0 %v1917
        %2576 = vmatpush.bf16.xpose.msra.mxu0 %v1916
        %2577 = vmatpush.bf16.xpose.msra.mxu0 %v1915
        %2578 = vmatpush.bf16.xpose.msra.mxu0 %v1914
        %2579 = vmatmul.bf16.gmra.mxu0 %v145
        %v2580 = vpop.f32.mrf.mxu0
        %v2581 = vadd.f32 0.0, %v2580
        %v2582 = vpop.f32.mrf.mxu0
        %2583 = vdwg.mxu0
        %2584 = vmatpush.bf16.xpose.msra.mxu0 %v1929
        %2585 = vmatpush.bf16.xpose.msra.mxu0 %v1928
        %2586 = vmatpush.bf16.xpose.msra.mxu0 %v1927
        %2587 = vmatpush.bf16.xpose.msra.mxu0 %v1926
        %2588 = vmatpush.bf16.xpose.msra.mxu0 %v1925
        %2589 = vmatpush.bf16.xpose.msra.mxu0 %v1924
        %2590 = vmatpush.bf16.xpose.msra.mxu0 %v1923
        %2591 = vmatpush.bf16.xpose.msra.mxu0 %v1922
        %2592 = vmatmul.bf16.gmra.mxu0 %v145
        %v2593 = vpop.f32.mrf.mxu0
        %v2594 = vadd.f32 0.0, %v2593
        %v2595 = vpop.f32.mrf.mxu0
        %2596 = vdwg.mxu0
        %2597 = vmatpush.bf16.xpose.msra.mxu0 %v1937
        %2598 = vmatpush.bf16.xpose.msra.mxu0 %v1936
        %2599 = vmatpush.bf16.xpose.msra.mxu0 %v1935
        %2600 = vmatpush.bf16.xpose.msra.mxu0 %v1934
        %2601 = vmatpush.bf16.xpose.msra.mxu0 %v1933
        %2602 = vmatpush.bf16.xpose.msra.mxu0 %v1932
        %2603 = vmatpush.bf16.xpose.msra.mxu0 %v1931
        %2604 = vmatpush.bf16.xpose.msra.mxu0 %v1930
        %2605 = vmatmul.bf16.gmra.mxu0 %v145
        %v2606 = vpop.f32.mrf.mxu0
        %v2607 = vadd.f32 0.0, %v2606
        %v2608 = vpop.f32.mrf.mxu0
        %2609 = vdwg.mxu0
        %2610 = vst [vmem:[%s137] sm:$0xff] %v2204
        %2611 = vst [vmem:[%s137 + $0x8] sm:$0xff] %v2217
        %2612 = vst [vmem:[%s137 + $0x10] sm:$0xff] %v2230
        %2613 = vst [vmem:[%s137 + $0x18] sm:$0xff] %v2243
        %2614 = vst [vmem:[%s137 + $0x20] sm:$0xff] %v2256
        %2615 = vst [vmem:[%s137 + $0x28] sm:$0xff] %v2269
        %2616 = vst [vmem:[%s137 + $0x30] sm:$0xff] %v2282
        %2617 = vst [vmem:[%s137 + $0x38] sm:$0xff] %v2295
        %2618 = vst [vmem:[%s137 + $0x40] sm:$0xff] %v2308
        %2619 = vst [vmem:[%s137 + $0x48] sm:$0xff] %v2321
        %2620 = vst [vmem:[%s137 + $0x50] sm:$0xff] %v2334
        %2621 = vst [vmem:[%s137 + $0x58] sm:$0xff] %v2347
        %2622 = vst [vmem:[%s137 + $0x60] sm:$0xff] %v2360
        %2623 = vst [vmem:[%s137 + $0x68] sm:$0xff] %v2373
        %2624 = vst [vmem:[%s137 + $0x70] sm:$0xff] %v2386
        %2625 = vst [vmem:[%s137 + $0x78] sm:$0xff] %v2399
        %2626 = vst [vmem:[%s137 + $0x80] sm:$0xff] %v2412
        %2627 = vst [vmem:[%s137 + $0x88] sm:$0xff] %v2425
        %2628 = vst [vmem:[%s137 + $0x90] sm:$0xff] %v2438
        %2629 = vst [vmem:[%s137 + $0x98] sm:$0xff] %v2451
        %2630 = vst [vmem:[%s137 + $0xa0] sm:$0xff] %v2464
        %2631 = vst [vmem:[%s137 + $0xa8] sm:$0xff] %v2477
        %2632 = vst [vmem:[%s137 + $0xb0] sm:$0xff] %v2490
        %2633 = vst [vmem:[%s137 + $0xb8] sm:$0xff] %v2503
        %2634 = vst [vmem:[%s137 + $0xc0] sm:$0xff] %v2516
        %2635 = vst [vmem:[%s137 + $0xc8] sm:$0xff] %v2529
        %2636 = vst [vmem:[%s137 + $0xd0] sm:$0xff] %v2542
        %2637 = vst [vmem:[%s137 + $0xd8] sm:$0xff] %v2555
        %2638 = vst [vmem:[%s137 + $0xe0] sm:$0xff] %v2568
        %2639 = vst [vmem:[%s137 + $0xe8] sm:$0xff] %v2581
        %2640 = vst [vmem:[%s137 + $0xf0] sm:$0xff] %v2594
        %2641 = vst [vmem:[%s137 + $0xf8] sm:$0xff] %v2607
        %s2642 = sand.u32 %s71, 1
        %s2643 = scalar_lea.sflag [#allocation3], %s2642
        %s2644 = sand.u32 %s71, 1
        %s2645 = smul.addr %s2644, 256
        %s2646 = scalar_lea.vmem [#allocation2], %s2645
        // Predicated region
        $region29: #{moco_forward.4} parent=27 // pred_check
          %p2647 = pneg %p81
        $region30: #{moco_forward.4} parent=27 // pred_check_branch
          %2649 = sbr.rel (%p2647) target = $region32
        $region31: #{moco_forward.4} parent=27 // pred_region
          %s2650 = smul.u32 32, %s16
          %2652 = vsyncadd %s2643, 0
          %s2653 = smul.addr %s2650, 8
          %s2654 = scalar_lea.hbm %s2, %s2653
          %s2656 = sshll.u32 %s2646, 4
          %s2657 = int_to_ptr.vmem [resolvable:$true] %s2656
          %s2658 = sshll.u32 %s2654, 4
          %s2659 = int_to_ptr.hbm [resolvable:$true] %s2658
          %2661 = dma.vmem_to_hbm [thread:$0]  %s2657, 4096, %s2659, %s2643
        $region32: #{moco_forward.4} parent=27 // pred_fallthru
          _
      $region28: #{moco_forward.4} parent=5 // pred_fallthru
        _
      %p2662 = scmp.le.s32.totalorder 2, %s11
      // Predicated region
      $region33: #{moco_forward.4} parent=5 // pred_check
        %p2663 = pneg %p2662
      $region34: #{moco_forward.4} parent=5 // pred_check_branch
        %2665 = sbr.rel (%p2663) target = $region36
      $region35: #{moco_forward.4} parent=5 // pred_region
        %s2666 = ssub.s32 %s11, 2
        // Predicated region
        $region37: #{moco_forward.4} parent=35 // pred_check
          %p2667 = pneg %p87
        $region38: #{moco_forward.4} parent=35 // pred_check_branch
          %2669 = sbr.rel (%p2667) target = $region40
        $region39: #{moco_forward.4} parent=35 // pred_region
          %s2670 = sand.u32 %s72, 1
          %s2671 = scalar_lea.sflag [#allocation3], %s2670
          %s2672 = sand.u32 %s72, 1
          %s2673 = smul.addr %s2672, 256
          %s2674 = scalar_lea.vmem [#allocation2], %s2673
          %2676 = dma.done %s2671, 4096
        $region40: #{moco_forward.4} parent=35 // pred_fallthru
          _
      $region36: #{moco_forward.4} parent=5 // pred_fallthru
        _
    $region6: #{moco_forward.4} parent=1 // loop_footer
      %s15 = sadd.s32 1, %s11
    $region7: #{moco_forward.4} parent=1 // loop_footer_branch
      %10 = sbr.rel target = $region3
    $region8: #{moco_forward.4} parent=1 // loop_exit
      _
    %2677 = vsyncpa [#allocation3], 1
    %s2678 = scalar_lea.sflag [#allocation3], 1
    %2679 = vsyncpa %s2678, 1

</llo_original>
